<compile_context>
chip_gen: v6e
topology: v6e:2x2x1
jax: 0.10.0
libtpu: 0.0.40
codegen_flags: <defaults>
</compile_context>

<pallas_src>
import jax
import jax.numpy as jnp
from jax.experimental import pallas as pl
from jax.experimental.pallas import tpu as pltpu

EXPANSION = 4
BN_EPS = 1e-5


def _bn_fold(h, gamma, beta):
    """Training-mode BatchNorm2d folded to per-channel scale/shift.

    h: (P, C) f32, reduction over axis 0 (= N*H*W).  One pass: sum and
    sum-of-squares, then h*scale + shift.  Kept in f32 for stability.
    """
    inv_p = 1.0 / h.shape[0]
    s = jnp.sum(h, axis=0, keepdims=True)
    ss = jnp.sum(h * h, axis=0, keepdims=True)
    mean = s * inv_p
    var = jnp.maximum(ss * inv_p - mean * mean, 0.0)
    scale = gamma * jax.lax.rsqrt(var + BN_EPS)
    shift = beta - mean * scale
    return h * scale + shift


def bottleneck_kernel(x_ref, w1_ref, g1_ref, b1_ref,
                      w2_ref, g2_ref, b2_ref,
                      w3_ref, g3_ref, b3_ref,
                      out_ref, pad_ref, col_ref):
    # x_ref: (N, H, W, Cin) f32 NHWC.  w1/w2/w3 arrive pre-cast to bf16;
    # w2 is pre-reshaped to (9*C, C) matching the im2col column order.
    N, H, W, Cin = x_ref.shape
    C = w1_ref.shape[1]
    P = N * H * W

    # Identity kept in f32 for the residual add.
    x2 = x_ref[...].reshape(P, Cin)

    # ---- conv1 (1x1): bf16 MXU matmul, f32 accumulation, then BN + ReLU ----
    h1 = jnp.dot(x2.astype(jnp.bfloat16), w1_ref[...],
                 preferred_element_type=jnp.float32)
    h1 = jnp.maximum(_bn_fold(h1, g1_ref[...], b1_ref[...]), 0.0)

    # ---- conv2 (3x3, stride 1, pad 1) as a single im2col matmul (K = 9*C) ---
    # Zero only the 1-pixel border of the padded scratch, write the interior.
    zr = jnp.zeros((N, 1, W + 2, C), jnp.float32)
    zc = jnp.zeros((N, H + 2, 1, C), jnp.float32)
    pad_ref[:, 0:1, :, :] = zr
    pad_ref[:, H + 1:H + 2, :, :] = zr
    pad_ref[:, :, 0:1, :] = zc
    pad_ref[:, :, W + 1:W + 2, :] = zc
    pad_ref[:, 1:1 + H, 1:1 + W, :] = h1.reshape(N, H, W, C)

    # Assemble the (P, 9*C) im2col buffer in bf16.  Column blocks are ordered
    # (dy, dx, cin) to match w2_ref's row-major (3,3,C,C) -> (9C, C) reshape.
    for k in range(9):
        dy, dx = divmod(k, 3)
        win = pad_ref[:, dy:dy + H, dx:dx + W, :].reshape(P, C)
        col_ref[:, k * C:(k + 1) * C] = win.astype(jnp.bfloat16)

    h2 = jnp.dot(col_ref[...], w2_ref[...], preferred_element_type=jnp.float32)
    h2 = jnp.maximum(_bn_fold(h2, g2_ref[...], b2_ref[...]), 0.0)

    # ---- conv3 (1x1 expansion) + BN ----
    h3 = jnp.dot(h2.astype(jnp.bfloat16), w3_ref[...],
                 preferred_element_type=jnp.float32)
    h3 = _bn_fold(h3, g3_ref[...], b3_ref[...])

    # ---- residual add (identity == x; Cin == 4*C) + final ReLU ----
    out = jnp.maximum(h3 + x2, 0.0)
    out_ref[...] = out.reshape(N, H, W, Cin).astype(out_ref.dtype)


def bottleneck_nhwc(x_nhwc, p):
    """NHWC-in / NHWC-out core (preferred entry point: no layout transposes)."""
    N, H, W, Cin = x_nhwc.shape
    C = p['w1'].shape[1]
    Cout = C * EXPANSION
    assert Cin == Cout, "residual add without downsample requires in_ch == 4*out_ch"
    P = N * H * W

    x = x_nhwc.astype(jnp.float32)
    w1 = p['w1'].astype(jnp.bfloat16)                       # (Cin, C)
    w2 = p['w2'].reshape(9 * C, C).astype(jnp.bfloat16)     # (3,3,C,C) HWIO -> (9C, C)
    w3 = p['w3'].astype(jnp.bfloat16)                       # (C, 4C)

    def spec(shape):
        return pl.BlockSpec(shape, lambda i: (0,) * len(shape))

    flops = 2 * P * (Cin * C + 9 * C * C + C * Cout) + 12 * P * (2 * C + Cout)
    bytes_accessed = (4 * P * (Cin + Cout)                    # x in, out
                      + 2 * (Cin * C + 9 * C * C + C * Cout)  # bf16 weights
                      + 4 * 2 * (2 * C + Cout))               # BN params
    cost = pl.CostEstimate(flops=flops, transcendentals=2 * C + Cout,
                           bytes_accessed=bytes_accessed)

    out = pl.pallas_call(
        bottleneck_kernel,
        out_shape=jax.ShapeDtypeStruct((N, H, W, Cout), jnp.float32),
        grid_spec=pltpu.PrefetchScalarGridSpec(
            num_scalar_prefetch=0,
            grid=(1,),
            in_specs=[spec(x.shape),
                      spec(w1.shape), spec(p['g1'].shape), spec(p['b1'].shape),
                      spec(w2.shape), spec(p['g2'].shape), spec(p['b2'].shape),
                      spec(w3.shape), spec(p['g3'].shape), spec(p['b3'].shape)],
            out_specs=spec((N, H, W, Cout)),
            scratch_shapes=[
                pltpu.VMEM((N, H + 2, W + 2, C), jnp.float32),   # zero-padded h1
                pltpu.VMEM((P, 9 * C), jnp.bfloat16),            # im2col buffer
            ],
        ),
        compiler_params=pltpu.CompilerParams(
            dimension_semantics=("arbitrary",),
            vmem_limit_bytes=32 * 1024 * 1024),
        cost_estimate=cost,
    )(x, w1, p['g1'], p['b1'], w2, p['g2'], p['b2'], w3, p['g3'], p['b3'])
    return out


def bottleneck(x_nchw, p):
    """PyTorch-convention wrapper: NCHW in / NCHW out (transposes at the edge).

    In a full network, keep activations NHWC and call bottleneck_nhwc directly
    so these two HBM-bandwidth transposes disappear.
    """
    x_nhwc = jnp.transpose(x_nchw, (0, 2, 3, 1))
    out_nhwc = bottleneck_nhwc(x_nhwc, p)
    return jnp.transpose(out_nhwc, (0, 3, 1, 2))


def bottleneck_ref(x_nchw, p):
    """Pure-JAX reference with matching numerics (bf16 matmul operands,
    f32 accumulation, training-mode batch-stat BN)."""
    bf = jnp.bfloat16
    x = jnp.transpose(x_nchw, (0, 2, 3, 1)).astype(jnp.float32)

    def bn(h, g, b):
        m = jnp.mean(h, axis=(0, 1, 2), keepdims=True)
        v = jnp.mean((h - m) ** 2, axis=(0, 1, 2), keepdims=True)
        return (h - m) / jnp.sqrt(v + BN_EPS) * g.reshape(1, 1, 1, -1) + b.reshape(1, 1, 1, -1)

    h = jnp.einsum('nhwc,cd->nhwd', x.astype(bf), p['w1'].astype(bf),
                   preferred_element_type=jnp.float32)
    h = jax.nn.relu(bn(h, p['g1'], p['b1']))
    h = jax.lax.conv_general_dilated(h.astype(bf), p['w2'].astype(bf), (1, 1), 'SAME',
                                     dimension_numbers=('NHWC', 'HWIO', 'NHWC'),
                                     preferred_element_type=jnp.float32)
    h = jax.nn.relu(bn(h, p['g2'], p['b2']))
    h = jnp.einsum('nhwc,cd->nhwd', h.astype(bf), p['w3'].astype(bf),
                   preferred_element_type=jnp.float32)
    h = bn(h, p['g3'], p['b3'])
    out = jax.nn.relu(h + x)
    return jnp.transpose(out, (0, 3, 1, 2))


if __name__ == "__main__":
    key = jax.random.PRNGKey(0)
    # out_channel C = 32 -> in_channel = expansion * C = 128, so the kernel's
    # input/output channel (lane) axis is fully dense (128 lanes).
    N, C, H, W = 2, 32, 8, 8
    C_in = C * EXPANSION

    ks = jax.random.split(key, 10)
    params = {
        'w1': 0.1 * jax.random.normal(ks[0], (C_in, C), jnp.float32),          # 1x1: (Cin, C)
        'g1': 1.0 + 0.1 * jax.random.normal(ks[1], (1, C), jnp.float32),
        'b1': 0.1 * jax.random.normal(ks[2], (1, C), jnp.float32),
        'w2': 0.1 * jax.random.normal(ks[3], (3, 3, C, C), jnp.float32),       # 3x3: HWIO
        'g2': 1.0 + 0.1 * jax.random.normal(ks[4], (1, C), jnp.float32),
        'b2': 0.1 * jax.random.normal(ks[5], (1, C), jnp.float32),
        'w3': 0.1 * jax.random.normal(ks[6], (C, C * EXPANSION), jnp.float32), # 1x1: (C, 4C)
        'g3': 1.0 + 0.1 * jax.random.normal(ks[7], (1, C * EXPANSION), jnp.float32),
        'b3': 0.1 * jax.random.normal(ks[8], (1, C * EXPANSION), jnp.float32),
    }
    x = jax.random.normal(ks[9], (N, C_in, H, W), jnp.float32)

    out = bottleneck(x, params)
    jax.block_until_ready(out)

    ref = bottleneck_ref(x, params)
    assert out.shape == (N, C_in, H, W)
    assert jnp.allclose(out, ref, atol=5e-3, rtol=5e-3), "mismatch vs JAX reference"
    print("KERNEL_OK")
</pallas_src>

<mosaic_0001>
module attributes {stable_mosaic.version = 11 : i64} {
  func.func @bottleneck_kernel(%arg0: i32, %arg1: memref<2x8x8x128xf32, #tpu.memory_space<vmem>>, %arg2: memref<128x32xbf16, #tpu.memory_space<vmem>>, %arg3: memref<1x32xf32, #tpu.memory_space<vmem>>, %arg4: memref<1x32xf32, #tpu.memory_space<vmem>>, %arg5: memref<288x32xbf16, #tpu.memory_space<vmem>>, %arg6: memref<1x32xf32, #tpu.memory_space<vmem>>, %arg7: memref<1x32xf32, #tpu.memory_space<vmem>>, %arg8: memref<32x128xbf16, #tpu.memory_space<vmem>>, %arg9: memref<1x128xf32, #tpu.memory_space<vmem>>, %arg10: memref<1x128xf32, #tpu.memory_space<vmem>>, %arg11: memref<2x8x8x128xf32, #tpu.memory_space<vmem>>, %arg12: memref<2x10x10x32xf32, #tpu.memory_space<vmem>>, %arg13: memref<128x288xbf16, #tpu.memory_space<vmem>>) attributes {dimension_semantics = [#tpu.dimension_semantics<arbitrary>], iteration_bounds = array<i64: 1>, scalar_prefetch = 0 : i64, scratch_operands = 2 : i64, tpu.core_type = #tpu.core_type<tc>, window_params = [{pipeline_mode = #tpu.pipeline_mode<synchronous>, transform_indices = @transform_0, window_bounds = array<i64: 2, 8, 8, 128>}, {pipeline_mode = #tpu.pipeline_mode<synchronous>, transform_indices = @transform_1, window_bounds = array<i64: 128, 32>}, {pipeline_mode = #tpu.pipeline_mode<synchronous>, transform_indices = @transform_2, window_bounds = array<i64: 1, 32>}, {pipeline_mode = #tpu.pipeline_mode<synchronous>, transform_indices = @transform_3, window_bounds = array<i64: 1, 32>}, {pipeline_mode = #tpu.pipeline_mode<synchronous>, transform_indices = @transform_4, window_bounds = array<i64: 288, 32>}, {pipeline_mode = #tpu.pipeline_mode<synchronous>, transform_indices = @transform_5, window_bounds = array<i64: 1, 32>}, {pipeline_mode = #tpu.pipeline_mode<synchronous>, transform_indices = @transform_6, window_bounds = array<i64: 1, 32>}, {pipeline_mode = #tpu.pipeline_mode<synchronous>, transform_indices = @transform_7, window_bounds = array<i64: 32, 128>}, {pipeline_mode = #tpu.pipeline_mode<synchronous>, transform_indices = @transform_8, window_bounds = array<i64: 1, 128>}, {pipeline_mode = #tpu.pipeline_mode<synchronous>, transform_indices = @transform_9, window_bounds = array<i64: 1, 128>}, {pipeline_mode = #tpu.pipeline_mode<synchronous>, transform_indices = @transform_10, window_bounds = array<i64: 2, 8, 8, 128>}]} {
    %c0 = arith.constant 0 : index
    %c0_0 = arith.constant 0 : index
    %c0_1 = arith.constant 0 : index
    %c0_2 = arith.constant 0 : index
    %0 = vector.load %arg1[%c0, %c0_0, %c0_1, %c0_2] : memref<2x8x8x128xf32, #tpu.memory_space<vmem>>, vector<2x8x8x128xf32>
    %1 = vector.shape_cast %0 : vector<2x8x8x128xf32> to vector<128x128xf32>
    %2 = arith.truncf %1 : vector<128x128xf32> to vector<128x128xbf16>
    %c0_3 = arith.constant 0 : index
    %c0_4 = arith.constant 0 : index
    %3 = vector.load %arg2[%c0_3, %c0_4] : memref<128x32xbf16, #tpu.memory_space<vmem>>, vector<128x32xbf16>
    %cst = arith.constant dense<0.000000e+00> : vector<128x32xf32>
    %4 = tpu.matmul %2, %3, %cst {dimension_numbers = #tpu.dot_dimension_numbers<[1], [0], [0], [1], [0, 0, 1, 1], [], []>} : vector<128x128xbf16>, vector<128x32xbf16>, vector<128x32xf32> -> vector<128x32xf32>
    %c0_5 = arith.constant 0 : index
    %c0_6 = arith.constant 0 : index
    %5 = vector.load %arg3[%c0_5, %c0_6] : memref<1x32xf32, #tpu.memory_space<vmem>>, vector<1x32xf32>
    %c0_7 = arith.constant 0 : index
    %c0_8 = arith.constant 0 : index
    %6 = vector.load %arg4[%c0_7, %c0_8] : memref<1x32xf32, #tpu.memory_space<vmem>>, vector<1x32xf32>
    %cst_9 = arith.constant dense<0.000000e+00> : vector<32xf32>
    %7 = vector.multi_reduction <add>, %4, %cst_9 [0] : vector<128x32xf32> to vector<32xf32>
    %8 = vector.shape_cast %7 : vector<32xf32> to vector<1x32xf32>
    %9 = arith.mulf %4, %4 : vector<128x32xf32>
    %cst_10 = arith.constant dense<0.000000e+00> : vector<32xf32>
    %10 = vector.multi_reduction <add>, %9, %cst_10 [0] : vector<128x32xf32> to vector<32xf32>
    %11 = vector.shape_cast %10 : vector<32xf32> to vector<1x32xf32>
    %cst_11 = arith.constant 7.812500e-03 : f32
    %12 = vector.broadcast %cst_11 : f32 to vector<1x32xf32>
    %13 = arith.mulf %8, %12 : vector<1x32xf32>
    %cst_12 = arith.constant 7.812500e-03 : f32
    %14 = vector.broadcast %cst_12 : f32 to vector<1x32xf32>
    %15 = arith.mulf %11, %14 : vector<1x32xf32>
    %16 = arith.mulf %13, %13 : vector<1x32xf32>
    %17 = arith.subf %15, %16 : vector<1x32xf32>
    %cst_13 = arith.constant 0.000000e+00 : f32
    %18 = vector.broadcast %cst_13 : f32 to vector<1x32xf32>
    %19 = arith.maximumf %17, %18 : vector<1x32xf32>
    %cst_14 = arith.constant 9.99999974E-6 : f32
    %20 = vector.broadcast %cst_14 : f32 to vector<1x32xf32>
    %21 = arith.addf %19, %20 : vector<1x32xf32>
    %22 = math.rsqrt %21 : vector<1x32xf32>
    %23 = arith.mulf %5, %22 : vector<1x32xf32>
    %24 = arith.mulf %13, %23 : vector<1x32xf32>
    %25 = arith.subf %6, %24 : vector<1x32xf32>
    %26 = vector.broadcast %23 : vector<1x32xf32> to vector<128x32xf32>
    %27 = arith.mulf %4, %26 : vector<128x32xf32>
    %28 = vector.broadcast %25 : vector<1x32xf32> to vector<128x32xf32>
    %29 = arith.addf %27, %28 : vector<128x32xf32>
    %cst_15 = arith.constant 0.000000e+00 : f32
    %30 = vector.broadcast %cst_15 : f32 to vector<128x32xf32>
    %31 = arith.maximumf %29, %30 : vector<128x32xf32>
    %cst_16 = arith.constant 0.000000e+00 : f32
    %32 = vector.broadcast %cst_16 : f32 to vector<2x1x10x32xf32>
    %cst_17 = arith.constant 0.000000e+00 : f32
    %33 = vector.broadcast %cst_17 : f32 to vector<2x10x1x32xf32>
    %c0_18 = arith.constant 0 : index
    %c0_19 = arith.constant 0 : index
    %c0_20 = arith.constant 0 : index
    %c0_21 = arith.constant 0 : index
    %34 = vector.load %arg12[%c0_18, %c0_19, %c0_20, %c0_21] : memref<2x10x10x32xf32, #tpu.memory_space<vmem>>, vector<2x1x10x32xf32>
    tpu.vector_store %arg12[%c0_18, %c0_19, %c0_20, %c0_21], %32 {strides = array<i32>} : memref<2x10x10x32xf32, #tpu.memory_space<vmem>>, vector<2x1x10x32xf32>,
    %c0_22 = arith.constant 0 : index
    %c9 = arith.constant 9 : index
    %c0_23 = arith.constant 0 : index
    %c0_24 = arith.constant 0 : index
    %35 = vector.load %arg12[%c0_22, %c9, %c0_23, %c0_24] : memref<2x10x10x32xf32, #tpu.memory_space<vmem>>, vector<2x1x10x32xf32>
    tpu.vector_store %arg12[%c0_22, %c9, %c0_23, %c0_24], %32 {strides = array<i32>} : memref<2x10x10x32xf32, #tpu.memory_space<vmem>>, vector<2x1x10x32xf32>,
    %c0_25 = arith.constant 0 : index
    %c0_26 = arith.constant 0 : index
    %c0_27 = arith.constant 0 : index
    %c0_28 = arith.constant 0 : index
    %36 = vector.load %arg12[%c0_25, %c0_26, %c0_27, %c0_28] : memref<2x10x10x32xf32, #tpu.memory_space<vmem>>, vector<2x10x1x32xf32>
    tpu.vector_store %arg12[%c0_25, %c0_26, %c0_27, %c0_28], %33 {strides = array<i32>} : memref<2x10x10x32xf32, #tpu.memory_space<vmem>>, vector<2x10x1x32xf32>,
    %c0_29 = arith.constant 0 : index
    %c0_30 = arith.constant 0 : index
    %c9_31 = arith.constant 9 : index
    %c0_32 = arith.constant 0 : index
    %37 = vector.load %arg12[%c0_29, %c0_30, %c9_31, %c0_32] : memref<2x10x10x32xf32, #tpu.memory_space<vmem>>, vector<2x10x1x32xf32>
    tpu.vector_store %arg12[%c0_29, %c0_30, %c9_31, %c0_32], %33 {strides = array<i32>} : memref<2x10x10x32xf32, #tpu.memory_space<vmem>>, vector<2x10x1x32xf32>,
    %38 = vector.shape_cast %31 : vector<128x32xf32> to vector<2x8x8x32xf32>
    %c0_33 = arith.constant 0 : index
    %c1 = arith.constant 1 : index
    %c1_34 = arith.constant 1 : index
    %c0_35 = arith.constant 0 : index
    %39 = vector.load %arg12[%c0_33, %c1, %c1_34, %c0_35] : memref<2x10x10x32xf32, #tpu.memory_space<vmem>>, vector<2x8x8x32xf32>
    tpu.vector_store %arg12[%c0_33, %c1, %c1_34, %c0_35], %38 {strides = array<i32>} : memref<2x10x10x32xf32, #tpu.memory_space<vmem>>, vector<2x8x8x32xf32>,
    %c0_36 = arith.constant 0 : index
    %c0_37 = arith.constant 0 : index
    %c0_38 = arith.constant 0 : index
    %c0_39 = arith.constant 0 : index
    %40 = vector.load %arg12[%c0_36, %c0_37, %c0_38, %c0_39] : memref<2x10x10x32xf32, #tpu.memory_space<vmem>>, vector<2x8x8x32xf32>
    %41 = vector.shape_cast %40 : vector<2x8x8x32xf32> to vector<128x32xf32>
    %42 = arith.truncf %41 : vector<128x32xf32> to vector<128x32xbf16>
    %c0_40 = arith.constant 0 : index
    %c0_41 = arith.constant 0 : index
    %43 = vector.load %arg13[%c0_40, %c0_41] : memref<128x288xbf16, #tpu.memory_space<vmem>>, vector<128x32xbf16>
    tpu.vector_store %arg13[%c0_40, %c0_41], %42 {strides = array<i32>} : memref<128x288xbf16, #tpu.memory_space<vmem>>, vector<128x32xbf16>,
    %c0_42 = arith.constant 0 : index
    %c0_43 = arith.constant 0 : index
    %c1_44 = arith.constant 1 : index
    %c0_45 = arith.constant 0 : index
    %44 = vector.load %arg12[%c0_42, %c0_43, %c1_44, %c0_45] : memref<2x10x10x32xf32, #tpu.memory_space<vmem>>, vector<2x8x8x32xf32>
    %45 = vector.shape_cast %44 : vector<2x8x8x32xf32> to vector<128x32xf32>
    %46 = arith.truncf %45 : vector<128x32xf32> to vector<128x32xbf16>
    %c0_46 = arith.constant 0 : index
    %c32 = arith.constant 32 : index
    %47 = vector.load %arg13[%c0_46, %c32] : memref<128x288xbf16, #tpu.memory_space<vmem>>, vector<128x32xbf16>
    tpu.vector_store %arg13[%c0_46, %c32], %46 {strides = array<i32>} : memref<128x288xbf16, #tpu.memory_space<vmem>>, vector<128x32xbf16>,
    %c0_47 = arith.constant 0 : index
    %c0_48 = arith.constant 0 : index
    %c2 = arith.constant 2 : index
    %c0_49 = arith.constant 0 : index
    %48 = vector.load %arg12[%c0_47, %c0_48, %c2, %c0_49] : memref<2x10x10x32xf32, #tpu.memory_space<vmem>>, vector<2x8x8x32xf32>
    %49 = vector.shape_cast %48 : vector<2x8x8x32xf32> to vector<128x32xf32>
    %50 = arith.truncf %49 : vector<128x32xf32> to vector<128x32xbf16>
    %c0_50 = arith.constant 0 : index
    %c64 = arith.constant 64 : index
    %51 = vector.load %arg13[%c0_50, %c64] : memref<128x288xbf16, #tpu.memory_space<vmem>>, vector<128x32xbf16>
    tpu.vector_store %arg13[%c0_50, %c64], %50 {strides = array<i32>} : memref<128x288xbf16, #tpu.memory_space<vmem>>, vector<128x32xbf16>,
    %c0_51 = arith.constant 0 : index
    %c1_52 = arith.constant 1 : index
    %c0_53 = arith.constant 0 : index
    %c0_54 = arith.constant 0 : index
    %52 = vector.load %arg12[%c0_51, %c1_52, %c0_53, %c0_54] : memref<2x10x10x32xf32, #tpu.memory_space<vmem>>, vector<2x8x8x32xf32>
    %53 = vector.shape_cast %52 : vector<2x8x8x32xf32> to vector<128x32xf32>
    %54 = arith.truncf %53 : vector<128x32xf32> to vector<128x32xbf16>
    %c0_55 = arith.constant 0 : index
    %c96 = arith.constant 96 : index
    %55 = vector.load %arg13[%c0_55, %c96] : memref<128x288xbf16, #tpu.memory_space<vmem>>, vector<128x32xbf16>
    tpu.vector_store %arg13[%c0_55, %c96], %54 {strides = array<i32>} : memref<128x288xbf16, #tpu.memory_space<vmem>>, vector<128x32xbf16>,
    %c0_56 = arith.constant 0 : index
    %c1_57 = arith.constant 1 : index
    %c1_58 = arith.constant 1 : index
    %c0_59 = arith.constant 0 : index
    %56 = vector.load %arg12[%c0_56, %c1_57, %c1_58, %c0_59] : memref<2x10x10x32xf32, #tpu.memory_space<vmem>>, vector<2x8x8x32xf32>
    %57 = vector.shape_cast %56 : vector<2x8x8x32xf32> to vector<128x32xf32>
    %58 = arith.truncf %57 : vector<128x32xf32> to vector<128x32xbf16>
    %c0_60 = arith.constant 0 : index
    %c128 = arith.constant 128 : index
    %59 = vector.load %arg13[%c0_60, %c128] : memref<128x288xbf16, #tpu.memory_space<vmem>>, vector<128x32xbf16>
    tpu.vector_store %arg13[%c0_60, %c128], %58 {strides = array<i32>} : memref<128x288xbf16, #tpu.memory_space<vmem>>, vector<128x32xbf16>,
    %c0_61 = arith.constant 0 : index
    %c1_62 = arith.constant 1 : index
    %c2_63 = arith.constant 2 : index
    %c0_64 = arith.constant 0 : index
    %60 = vector.load %arg12[%c0_61, %c1_62, %c2_63, %c0_64] : memref<2x10x10x32xf32, #tpu.memory_space<vmem>>, vector<2x8x8x32xf32>
    %61 = vector.shape_cast %60 : vector<2x8x8x32xf32> to vector<128x32xf32>
    %62 = arith.truncf %61 : vector<128x32xf32> to vector<128x32xbf16>
    %c0_65 = arith.constant 0 : index
    %c160 = arith.constant 160 : index
    %63 = vector.load %arg13[%c0_65, %c160] : memref<128x288xbf16, #tpu.memory_space<vmem>>, vector<128x32xbf16>
    tpu.vector_store %arg13[%c0_65, %c160], %62 {strides = array<i32>} : memref<128x288xbf16, #tpu.memory_space<vmem>>, vector<128x32xbf16>,
    %c0_66 = arith.constant 0 : index
    %c2_67 = arith.constant 2 : index
    %c0_68 = arith.constant 0 : index
    %c0_69 = arith.constant 0 : index
    %64 = vector.load %arg12[%c0_66, %c2_67, %c0_68, %c0_69] : memref<2x10x10x32xf32, #tpu.memory_space<vmem>>, vector<2x8x8x32xf32>
    %65 = vector.shape_cast %64 : vector<2x8x8x32xf32> to vector<128x32xf32>
    %66 = arith.truncf %65 : vector<128x32xf32> to vector<128x32xbf16>
    %c0_70 = arith.constant 0 : index
    %c192 = arith.constant 192 : index
    %67 = vector.load %arg13[%c0_70, %c192] : memref<128x288xbf16, #tpu.memory_space<vmem>>, vector<128x32xbf16>
    tpu.vector_store %arg13[%c0_70, %c192], %66 {strides = array<i32>} : memref<128x288xbf16, #tpu.memory_space<vmem>>, vector<128x32xbf16>,
    %c0_71 = arith.constant 0 : index
    %c2_72 = arith.constant 2 : index
    %c1_73 = arith.constant 1 : index
    %c0_74 = arith.constant 0 : index
    %68 = vector.load %arg12[%c0_71, %c2_72, %c1_73, %c0_74] : memref<2x10x10x32xf32, #tpu.memory_space<vmem>>, vector<2x8x8x32xf32>
    %69 = vector.shape_cast %68 : vector<2x8x8x32xf32> to vector<128x32xf32>
    %70 = arith.truncf %69 : vector<128x32xf32> to vector<128x32xbf16>
    %c0_75 = arith.constant 0 : index
    %c224 = arith.constant 224 : index
    %71 = vector.load %arg13[%c0_75, %c224] : memref<128x288xbf16, #tpu.memory_space<vmem>>, vector<128x32xbf16>
    tpu.vector_store %arg13[%c0_75, %c224], %70 {strides = array<i32>} : memref<128x288xbf16, #tpu.memory_space<vmem>>, vector<128x32xbf16>,
    %c0_76 = arith.constant 0 : index
    %c2_77 = arith.constant 2 : index
    %c2_78 = arith.constant 2 : index
    %c0_79 = arith.constant 0 : index
    %72 = vector.load %arg12[%c0_76, %c2_77, %c2_78, %c0_79] : memref<2x10x10x32xf32, #tpu.memory_space<vmem>>, vector<2x8x8x32xf32>
    %73 = vector.shape_cast %72 : vector<2x8x8x32xf32> to vector<128x32xf32>
    %74 = arith.truncf %73 : vector<128x32xf32> to vector<128x32xbf16>
    %c0_80 = arith.constant 0 : index
    %c256 = arith.constant 256 : index
    %75 = vector.load %arg13[%c0_80, %c256] : memref<128x288xbf16, #tpu.memory_space<vmem>>, vector<128x32xbf16>
    tpu.vector_store %arg13[%c0_80, %c256], %74 {strides = array<i32>} : memref<128x288xbf16, #tpu.memory_space<vmem>>, vector<128x32xbf16>,
    %c0_81 = arith.constant 0 : index
    %c0_82 = arith.constant 0 : index
    %76 = vector.load %arg13[%c0_81, %c0_82] : memref<128x288xbf16, #tpu.memory_space<vmem>>, vector<128x288xbf16>
    %c0_83 = arith.constant 0 : index
    %c0_84 = arith.constant 0 : index
    %77 = vector.load %arg5[%c0_83, %c0_84] : memref<288x32xbf16, #tpu.memory_space<vmem>>, vector<288x32xbf16>
    %cst_85 = arith.constant dense<0.000000e+00> : vector<128x32xf32>
    %78 = tpu.matmul %76, %77, %cst_85 {dimension_numbers = #tpu.dot_dimension_numbers<[1], [0], [0], [1], [0, 0, 1, 1], [], []>} : vector<128x288xbf16>, vector<288x32xbf16>, vector<128x32xf32> -> vector<128x32xf32>
    %c0_86 = arith.constant 0 : index
    %c0_87 = arith.constant 0 : index
    %79 = vector.load %arg6[%c0_86, %c0_87] : memref<1x32xf32, #tpu.memory_space<vmem>>, vector<1x32xf32>
    %c0_88 = arith.constant 0 : index
    %c0_89 = arith.constant 0 : index
    %80 = vector.load %arg7[%c0_88, %c0_89] : memref<1x32xf32, #tpu.memory_space<vmem>>, vector<1x32xf32>
    %cst_90 = arith.constant dense<0.000000e+00> : vector<32xf32>
    %81 = vector.multi_reduction <add>, %78, %cst_90 [0] : vector<128x32xf32> to vector<32xf32>
    %82 = vector.shape_cast %81 : vector<32xf32> to vector<1x32xf32>
    %83 = arith.mulf %78, %78 : vector<128x32xf32>
    %cst_91 = arith.constant dense<0.000000e+00> : vector<32xf32>
    %84 = vector.multi_reduction <add>, %83, %cst_91 [0] : vector<128x32xf32> to vector<32xf32>
    %85 = vector.shape_cast %84 : vector<32xf32> to vector<1x32xf32>
    %cst_92 = arith.constant 7.812500e-03 : f32
    %86 = vector.broadcast %cst_92 : f32 to vector<1x32xf32>
    %87 = arith.mulf %82, %86 : vector<1x32xf32>
    %cst_93 = arith.constant 7.812500e-03 : f32
    %88 = vector.broadcast %cst_93 : f32 to vector<1x32xf32>
    %89 = arith.mulf %85, %88 : vector<1x32xf32>
    %90 = arith.mulf %87, %87 : vector<1x32xf32>
    %91 = arith.subf %89, %90 : vector<1x32xf32>
    %cst_94 = arith.constant 0.000000e+00 : f32
    %92 = vector.broadcast %cst_94 : f32 to vector<1x32xf32>
    %93 = arith.maximumf %91, %92 : vector<1x32xf32>
    %cst_95 = arith.constant 9.99999974E-6 : f32
    %94 = vector.broadcast %cst_95 : f32 to vector<1x32xf32>
    %95 = arith.addf %93, %94 : vector<1x32xf32>
    %96 = math.rsqrt %95 : vector<1x32xf32>
    %97 = arith.mulf %79, %96 : vector<1x32xf32>
    %98 = arith.mulf %87, %97 : vector<1x32xf32>
    %99 = arith.subf %80, %98 : vector<1x32xf32>
    %100 = vector.broadcast %97 : vector<1x32xf32> to vector<128x32xf32>
    %101 = arith.mulf %78, %100 : vector<128x32xf32>
    %102 = vector.broadcast %99 : vector<1x32xf32> to vector<128x32xf32>
    %103 = arith.addf %101, %102 : vector<128x32xf32>
    %cst_96 = arith.constant 0.000000e+00 : f32
    %104 = vector.broadcast %cst_96 : f32 to vector<128x32xf32>
    %105 = arith.maximumf %103, %104 : vector<128x32xf32>
    %106 = arith.truncf %105 : vector<128x32xf32> to vector<128x32xbf16>
    %c0_97 = arith.constant 0 : index
    %c0_98 = arith.constant 0 : index
    %107 = vector.load %arg8[%c0_97, %c0_98] : memref<32x128xbf16, #tpu.memory_space<vmem>>, vector<32x128xbf16>
    %cst_99 = arith.constant dense<0.000000e+00> : vector<128x128xf32>
    %108 = tpu.matmul %106, %107, %cst_99 {dimension_numbers = #tpu.dot_dimension_numbers<[1], [0], [0], [1], [0, 0, 1, 1], [], []>} : vector<128x32xbf16>, vector<32x128xbf16>, vector<128x128xf32> -> vector<128x128xf32>
    %c0_100 = arith.constant 0 : index
    %c0_101 = arith.constant 0 : index
    %109 = vector.load %arg9[%c0_100, %c0_101] : memref<1x128xf32, #tpu.memory_space<vmem>>, vector<1x128xf32>
    %c0_102 = arith.constant 0 : index
    %c0_103 = arith.constant 0 : index
    %110 = vector.load %arg10[%c0_102, %c0_103] : memref<1x128xf32, #tpu.memory_space<vmem>>, vector<1x128xf32>
    %cst_104 = arith.constant dense<0.000000e+00> : vector<128xf32>
    %111 = vector.multi_reduction <add>, %108, %cst_104 [0] : vector<128x128xf32> to vector<128xf32>
    %112 = vector.shape_cast %111 : vector<128xf32> to vector<1x128xf32>
    %113 = arith.mulf %108, %108 : vector<128x128xf32>
    %cst_105 = arith.constant dense<0.000000e+00> : vector<128xf32>
    %114 = vector.multi_reduction <add>, %113, %cst_105 [0] : vector<128x128xf32> to vector<128xf32>
    %115 = vector.shape_cast %114 : vector<128xf32> to vector<1x128xf32>
    %cst_106 = arith.constant 7.812500e-03 : f32
    %116 = vector.broadcast %cst_106 : f32 to vector<1x128xf32>
    %117 = arith.mulf %112, %116 : vector<1x128xf32>
    %cst_107 = arith.constant 7.812500e-03 : f32
    %118 = vector.broadcast %cst_107 : f32 to vector<1x128xf32>
    %119 = arith.mulf %115, %118 : vector<1x128xf32>
    %120 = arith.mulf %117, %117 : vector<1x128xf32>
    %121 = arith.subf %119, %120 : vector<1x128xf32>
    %cst_108 = arith.constant 0.000000e+00 : f32
    %122 = vector.broadcast %cst_108 : f32 to vector<1x128xf32>
    %123 = arith.maximumf %121, %122 : vector<1x128xf32>
    %cst_109 = arith.constant 9.99999974E-6 : f32
    %124 = vector.broadcast %cst_109 : f32 to vector<1x128xf32>
    %125 = arith.addf %123, %124 : vector<1x128xf32>
    %126 = math.rsqrt %125 : vector<1x128xf32>
    %127 = arith.mulf %109, %126 : vector<1x128xf32>
    %128 = arith.mulf %117, %127 : vector<1x128xf32>
    %129 = arith.subf %110, %128 : vector<1x128xf32>
    %130 = vector.broadcast %127 : vector<1x128xf32> to vector<128x128xf32>
    %131 = arith.mulf %108, %130 : vector<128x128xf32>
    %132 = vector.broadcast %129 : vector<1x128xf32> to vector<128x128xf32>
    %133 = arith.addf %131, %132 : vector<128x128xf32>
    %134 = arith.addf %133, %1 : vector<128x128xf32>
    %cst_110 = arith.constant 0.000000e+00 : f32
    %135 = vector.broadcast %cst_110 : f32 to vector<128x128xf32>
    %136 = arith.maximumf %134, %135 : vector<128x128xf32>
    %137 = vector.shape_cast %136 : vector<128x128xf32> to vector<2x8x8x128xf32>
    %c0_111 = arith.constant 0 : index
    %c0_112 = arith.constant 0 : index
    %c0_113 = arith.constant 0 : index
    %c0_114 = arith.constant 0 : index
    %138 = vector.load %arg11[%c0_111, %c0_112, %c0_113, %c0_114] : memref<2x8x8x128xf32, #tpu.memory_space<vmem>>, vector<2x8x8x128xf32>
    tpu.vector_store %arg11[%c0_111, %c0_112, %c0_113, %c0_114], %137 {strides = array<i32>} : memref<2x8x8x128xf32, #tpu.memory_space<vmem>>, vector<2x8x8x128xf32>,
    return
  }
  func.func @transform_0(%arg0: i32) -> (i32, i32, i32, i32) {
    %c0_i32 = arith.constant 0 : i32
    %c0_i32_0 = arith.constant 0 : i32
    %c0_i32_1 = arith.constant 0 : i32
    %c0_i32_2 = arith.constant 0 : i32
    %c0_i32_3 = arith.constant 0 : i32
    return %c0_i32, %c0_i32_0, %c0_i32_1, %c0_i32_2 : i32, i32, i32, i32
  }
  func.func @transform_1(%arg0: i32) -> (i32, i32) {
    %c0_i32 = arith.constant 0 : i32
    %c0_i32_0 = arith.constant 0 : i32
    %c0_i32_1 = arith.constant 0 : i32
    return %c0_i32, %c0_i32_0 : i32, i32
  }
  func.func @transform_2(%arg0: i32) -> (i32, i32) {
    %c0_i32 = arith.constant 0 : i32
    %c0_i32_0 = arith.constant 0 : i32
    %c0_i32_1 = arith.constant 0 : i32
    return %c0_i32, %c0_i32_0 : i32, i32
  }
  func.func @transform_3(%arg0: i32) -> (i32, i32) {
    %c0_i32 = arith.constant 0 : i32
    %c0_i32_0 = arith.constant 0 : i32
    %c0_i32_1 = arith.constant 0 : i32
    return %c0_i32, %c0_i32_0 : i32, i32
  }
  func.func @transform_4(%arg0: i32) -> (i32, i32) {
    %c0_i32 = arith.constant 0 : i32
    %c0_i32_0 = arith.constant 0 : i32
    %c0_i32_1 = arith.constant 0 : i32
    return %c0_i32, %c0_i32_0 : i32, i32
  }
  func.func @transform_5(%arg0: i32) -> (i32, i32) {
    %c0_i32 = arith.constant 0 : i32
    %c0_i32_0 = arith.constant 0 : i32
    %c0_i32_1 = arith.constant 0 : i32
    return %c0_i32, %c0_i32_0 : i32, i32
  }
  func.func @transform_6(%arg0: i32) -> (i32, i32) {
    %c0_i32 = arith.constant 0 : i32
    %c0_i32_0 = arith.constant 0 : i32
    %c0_i32_1 = arith.constant 0 : i32
    return %c0_i32, %c0_i32_0 : i32, i32
  }
  func.func @transform_7(%arg0: i32) -> (i32, i32) {
    %c0_i32 = arith.constant 0 : i32
    %c0_i32_0 = arith.constant 0 : i32
    %c0_i32_1 = arith.constant 0 : i32
    return %c0_i32, %c0_i32_0 : i32, i32
  }
  func.func @transform_8(%arg0: i32) -> (i32, i32) {
    %c0_i32 = arith.constant 0 : i32
    %c0_i32_0 = arith.constant 0 : i32
    %c0_i32_1 = arith.constant 0 : i32
    return %c0_i32, %c0_i32_0 : i32, i32
  }
  func.func @transform_9(%arg0: i32) -> (i32, i32) {
    %c0_i32 = arith.constant 0 : i32
    %c0_i32_0 = arith.constant 0 : i32
    %c0_i32_1 = arith.constant 0 : i32
    return %c0_i32, %c0_i32_0 : i32, i32
  }
  func.func @transform_10(%arg0: i32) -> (i32, i32, i32, i32) {
    %c0_i32 = arith.constant 0 : i32
    %c0_i32_0 = arith.constant 0 : i32
    %c0_i32_1 = arith.constant 0 : i32
    %c0_i32_2 = arith.constant 0 : i32
    %c0_i32_3 = arith.constant 0 : i32
    return %c0_i32, %c0_i32_0, %c0_i32_1, %c0_i32_2 : i32, i32, i32, i32
  }
}

</mosaic_0001>

<llo_original>
// kernel: tpu_custom_call.1
$region0: #{tpu_custom_call.1}
  #allocation0 [shape = 'u32[]', space=smem, size = 0x4, offset = 0x4, fixed_abs, tag = 'smem constant byte address 0x4 - core index']
  #allocation1 [shape = 'u32[144,128]{1,0:T(1,128)}', space=vmem, size = 0x12000, scoped, tag = 'internal scratch']
  #allocation2 [shape = 'f32[2,10,10,32]{3,2,1,0:T(8,128)}', space=vmem, size = 0x28000, scoped, tag = 'scratch operand']
  #allocation3 [shape = 'bf16[128,288]{1,0:T(8,128)(2,1)}', space=vmem, size = 0x18000, scoped, tag = 'scratch operand']
  %s0 = inlined_call_operand.vmem [shape: f32[2,8,8,128], index: 0, kind: input, shape index: {}]
  %s1 = inlined_call_operand.vmem [shape: bf16[128,32], index: 1, kind: input, shape index: {}]
  %s2 = inlined_call_operand.vmem [shape: f32[1,32], index: 2, kind: input, shape index: {}]
  %s3 = inlined_call_operand.vmem [shape: f32[1,32], index: 3, kind: input, shape index: {}]
  %s4 = inlined_call_operand.vmem [shape: bf16[288,32], index: 4, kind: input, shape index: {}]
  %s5 = inlined_call_operand.vmem [shape: f32[1,32], index: 5, kind: input, shape index: {}]
  %s6 = inlined_call_operand.vmem [shape: f32[1,32], index: 6, kind: input, shape index: {}]
  %s7 = inlined_call_operand.vmem [shape: bf16[32,128], index: 7, kind: input, shape index: {}]
  %s8 = inlined_call_operand.vmem [shape: f32[1,128], index: 8, kind: input, shape index: {}]
  %s9 = inlined_call_operand.vmem [shape: f32[1,128], index: 9, kind: input, shape index: {}]
  %s10 = inlined_call_operand.hbm [shape: f32[2,8,8,128], index: 10, kind: output, shape index: {}]
  %s11 = sld [smem:[#allocation0]]
  $region50: #{tpu_custom_call.1} parent=0
    _
  %s13 = ssub.s32 1, %s11
  %s14 = scalar_select 0, %s13, %s11
  $region1: #{tpu_custom_call.1} parent=0
    #allocation4 [shape = 'u8[65536]{0}', space=vmem, size = 0x10000, scoped, tag = 'output window, operand 0, single buffered']
    #allocation5 [shape = 's32[1]{0}', space=sflag, size = 0x4, scoped, tag = 'scoped memory for tpu_custom_call.1']
    %15 = vsyncpa [#allocation5], 0
    // Predicated region
    $region2: #{tpu_custom_call.1} parent=1 // pred_check
      _
    $region3: #{tpu_custom_call.1} parent=1 // pred_check_branch
      %17 = sbr.rel (0) target = $region5
    $region4: #{tpu_custom_call.1} parent=1 // pred_region
      _
    $region5: #{tpu_custom_call.1} parent=1 // pred_fallthru
      _
    // Predicated region
    $region6: #{tpu_custom_call.1} parent=1 // pred_check
      _
    $region7: #{tpu_custom_call.1} parent=1 // pred_check_branch
      %19 = sbr.rel (0) target = $region9
    $region8: #{tpu_custom_call.1} parent=1 // pred_region
      _
    $region9: #{tpu_custom_call.1} parent=1 // pred_fallthru
      _
    // Predicated region
    $region10: #{tpu_custom_call.1} parent=1 // pred_check
      _
    $region11: #{tpu_custom_call.1} parent=1 // pred_check_branch
      %21 = sbr.rel (0) target = $region13
    $region12: #{tpu_custom_call.1} parent=1 // pred_region
      _
    $region13: #{tpu_custom_call.1} parent=1 // pred_fallthru
      _
    // Predicated region
    $region14: #{tpu_custom_call.1} parent=1 // pred_check
      _
    $region15: #{tpu_custom_call.1} parent=1 // pred_check_branch
      %23 = sbr.rel (0) target = $region17
    $region16: #{tpu_custom_call.1} parent=1 // pred_region
      _
    $region17: #{tpu_custom_call.1} parent=1 // pred_fallthru
      _
    // Predicated region
    $region18: #{tpu_custom_call.1} parent=1 // pred_check
      _
    $region19: #{tpu_custom_call.1} parent=1 // pred_check_branch
      %25 = sbr.rel (0) target = $region21
    $region20: #{tpu_custom_call.1} parent=1 // pred_region
      _
    $region21: #{tpu_custom_call.1} parent=1 // pred_fallthru
      _
    // Predicated region
    $region22: #{tpu_custom_call.1} parent=1 // pred_check
      _
    $region23: #{tpu_custom_call.1} parent=1 // pred_check_branch
      %27 = sbr.rel (0) target = $region25
    $region24: #{tpu_custom_call.1} parent=1 // pred_region
      _
    $region25: #{tpu_custom_call.1} parent=1 // pred_fallthru
      _
    // Predicated region
    $region26: #{tpu_custom_call.1} parent=1 // pred_check
      _
    $region27: #{tpu_custom_call.1} parent=1 // pred_check_branch
      %29 = sbr.rel (0) target = $region29
    $region28: #{tpu_custom_call.1} parent=1 // pred_region
      _
    $region29: #{tpu_custom_call.1} parent=1 // pred_fallthru
      _
    // Predicated region
    $region30: #{tpu_custom_call.1} parent=1 // pred_check
      _
    $region31: #{tpu_custom_call.1} parent=1 // pred_check_branch
      %31 = sbr.rel (0) target = $region33
    $region32: #{tpu_custom_call.1} parent=1 // pred_region
      _
    $region33: #{tpu_custom_call.1} parent=1 // pred_fallthru
      _
    // Predicated region
    $region34: #{tpu_custom_call.1} parent=1 // pred_check
      _
    $region35: #{tpu_custom_call.1} parent=1 // pred_check_branch
      %33 = sbr.rel (0) target = $region37
    $region36: #{tpu_custom_call.1} parent=1 // pred_region
      _
    $region37: #{tpu_custom_call.1} parent=1 // pred_fallthru
      _
    // Predicated region
    $region38: #{tpu_custom_call.1} parent=1 // pred_check
      _
    $region39: #{tpu_custom_call.1} parent=1 // pred_check_branch
      %35 = sbr.rel (0) target = $region41
    $region40: #{tpu_custom_call.1} parent=1 // pred_region
      _
    $region41: #{tpu_custom_call.1} parent=1 // pred_fallthru
      _
    %v37 = vld [vmem:[%s0] sm:$0xff]
    %v38 = vld [vmem:[%s0 + $0x8] sm:$0xff]
    %v39 = vld [vmem:[%s0 + $0x10] sm:$0xff]
    %v40 = vld [vmem:[%s0 + $0x18] sm:$0xff]
    %v41 = vld [vmem:[%s0 + $0x20] sm:$0xff]
    %v42 = vld [vmem:[%s0 + $0x28] sm:$0xff]
    %v43 = vld [vmem:[%s0 + $0x30] sm:$0xff]
    %v44 = vld [vmem:[%s0 + $0x38] sm:$0xff]
    %v45 = vld [vmem:[%s0 + $0x40] sm:$0xff]
    %v46 = vld [vmem:[%s0 + $0x48] sm:$0xff]
    %v47 = vld [vmem:[%s0 + $0x50] sm:$0xff]
    %v48 = vld [vmem:[%s0 + $0x58] sm:$0xff]
    %v49 = vld [vmem:[%s0 + $0x60] sm:$0xff]
    %v50 = vld [vmem:[%s0 + $0x68] sm:$0xff]
    %v51 = vld [vmem:[%s0 + $0x70] sm:$0xff]
    %v52 = vld [vmem:[%s0 + $0x78] sm:$0xff]
    %v53 = vpack.c.bf16 %v38, %v37
    %v54 = vpack.c.bf16 %v40, %v39
    %v55 = vpack.c.bf16 %v42, %v41
    %v56 = vpack.c.bf16 %v44, %v43
    %v57 = vpack.c.bf16 %v46, %v45
    %v58 = vpack.c.bf16 %v48, %v47
    %v59 = vpack.c.bf16 %v50, %v49
    %v60 = vpack.c.bf16 %v52, %v51
    %v61 = vld [vmem:[%s1] sm:$0xf]
    %v62 = vld [vmem:[%s1 + $0x4] sm:$0xf]
    %v63 = vld [vmem:[%s1 + $0x8] sm:$0xf]
    %v64 = vld [vmem:[%s1 + $0xc] sm:$0xf]
    %v65 = vld [vmem:[%s1 + $0x10] sm:$0xf]
    %v66 = vld [vmem:[%s1 + $0x14] sm:$0xf]
    %v67 = vld [vmem:[%s1 + $0x18] sm:$0xf]
    %v68 = vld [vmem:[%s1 + $0x1c] sm:$0xf]
    %v69 = vld [vmem:[%s1 + $0x20] sm:$0xf]
    %v70 = vld [vmem:[%s1 + $0x24] sm:$0xf]
    %v71 = vld [vmem:[%s1 + $0x28] sm:$0xf]
    %v72 = vld [vmem:[%s1 + $0x2c] sm:$0xf]
    %v73 = vld [vmem:[%s1 + $0x30] sm:$0xf]
    %v74 = vld [vmem:[%s1 + $0x34] sm:$0xf]
    %v75 = vld [vmem:[%s1 + $0x38] sm:$0xf]
    %v76 = vld [vmem:[%s1 + $0x3c] sm:$0xf]
    %v93 = vunpack.c.l.b16 %v61
    %v94 = vunpack.c.l.b16 %v62
    %v95 = vunpack.c.l.b16 %v63
    %v96 = vunpack.c.l.b16 %v64
    %v97 = vunpack.c.l.b16 %v65
    %v98 = vunpack.c.l.b16 %v66
    %v99 = vunpack.c.l.b16 %v67
    %v100 = vunpack.c.l.b16 %v68
    %v101 = vunpack.c.l.b16 %v69
    %v102 = vunpack.c.l.b16 %v70
    %v103 = vunpack.c.l.b16 %v71
    %v104 = vunpack.c.l.b16 %v72
    %v105 = vunpack.c.l.b16 %v73
    %v106 = vunpack.c.l.b16 %v74
    %v107 = vunpack.c.l.b16 %v75
    %v108 = vunpack.c.l.b16 %v76
    %v109 = vpack.c.b16 %v94, %v93
    %v110 = vpack.c.b16 %v96, %v95
    %v111 = vpack.c.b16 %v98, %v97
    %v112 = vpack.c.b16 %v100, %v99
    %v113 = vpack.c.b16 %v102, %v101
    %v114 = vpack.c.b16 %v104, %v103
    %v115 = vpack.c.b16 %v106, %v105
    %v116 = vpack.c.b16 %v108, %v107
    %125 = vmatprep.subr.bf16.mxu0 0
    %126 = vmatpush1.bf16.msra.mxu0 %v116
    %127 = vmatprep.subr.bf16.mxu0 0
    %128 = vmatpush1.bf16.msra.mxu0 %v115
    %129 = vmatprep.subr.bf16.mxu0 0
    %130 = vmatpush1.bf16.msra.mxu0 %v114
    %131 = vmatprep.subr.bf16.mxu0 0
    %132 = vmatpush1.bf16.msra.mxu0 %v113
    %133 = vmatprep.subr.bf16.mxu0 0
    %134 = vmatpush1.bf16.msra.mxu0 %v112
    %135 = vmatprep.subr.bf16.mxu0 0
    %136 = vmatpush1.bf16.msra.mxu0 %v111
    %137 = vmatprep.subr.bf16.mxu0 0
    %138 = vmatpush1.bf16.msra.mxu0 %v110
    %139 = vmatprep.subr.bf16.mxu0 0
    %140 = vmatpush1.bf16.msra.mxu0 %v109
    %141 = vmatprep.subr.bf16.mxu0 0
    %142 = vmatpush2.bf16.msra.mxu0 0
    %143 = vmatprep.subr.bf16.mxu0 0
    %144 = vmatpush2.bf16.msra.mxu0 0
    %145 = vmatprep.subr.bf16.mxu0 0
    %146 = vmatpush2.bf16.msra.mxu0 0
    %147 = vmatprep.subr.bf16.mxu0 0
    %148 = vmatpush2.bf16.msra.mxu0 0
    %149 = vmatprep.subr.bf16.mxu0 0
    %150 = vmatpush2.bf16.msra.mxu0 0
    %151 = vmatprep.subr.bf16.mxu0 0
    %152 = vmatpush2.bf16.msra.mxu0 0
    %153 = vmatprep.subr.bf16.mxu0 0
    %154 = vmatpush2.bf16.msra.mxu0 0
    %155 = vmatprep.subr.bf16.mxu0 0
    %156 = vmatpush2.bf16.msra.mxu0 0
    %157 = vmatprep.mubr.bf16.mxu0 0
    %158 = vmatmul.mubr.bf16.gmra.mxu0 %v53
    %v159 = vpop.f32.mrf.mxu0
    %v160 = vadd.f32 0.0, %v159
    %v161 = vpop.f32.mrf.mxu0
    %v162 = vpop.f32.mrf.mxu0
    %v163 = vadd.f32 0.0, %v162
    %v164 = vpop.f32.mrf.mxu0
    %165 = vmatprep.mubr.bf16.mxu0 0
    %166 = vmatmul.mubr.bf16.gmra.mxu0 %v54
    %v167 = vpop.f32.mrf.mxu0
    %v168 = vadd.f32 0.0, %v167
    %v169 = vpop.f32.mrf.mxu0
    %v170 = vpop.f32.mrf.mxu0
    %v171 = vadd.f32 0.0, %v170
    %v172 = vpop.f32.mrf.mxu0
    %173 = vmatprep.mubr.bf16.mxu0 0
    %174 = vmatmul.mubr.bf16.gmra.mxu0 %v55
    %v175 = vpop.f32.mrf.mxu0
    %v176 = vadd.f32 0.0, %v175
    %v177 = vpop.f32.mrf.mxu0
    %v178 = vpop.f32.mrf.mxu0
    %v179 = vadd.f32 0.0, %v178
    %v180 = vpop.f32.mrf.mxu0
    %181 = vmatprep.mubr.bf16.mxu0 0
    %182 = vmatmul.mubr.bf16.gmra.mxu0 %v56
    %v183 = vpop.f32.mrf.mxu0
    %v184 = vadd.f32 0.0, %v183
    %v185 = vpop.f32.mrf.mxu0
    %v186 = vpop.f32.mrf.mxu0
    %v187 = vadd.f32 0.0, %v186
    %v188 = vpop.f32.mrf.mxu0
    %189 = vmatprep.mubr.bf16.mxu0 0
    %190 = vmatmul.mubr.bf16.gmra.mxu0 %v57
    %v191 = vpop.f32.mrf.mxu0
    %v192 = vadd.f32 0.0, %v191
    %v193 = vpop.f32.mrf.mxu0
    %v194 = vpop.f32.mrf.mxu0
    %v195 = vadd.f32 0.0, %v194
    %v196 = vpop.f32.mrf.mxu0
    %197 = vmatprep.mubr.bf16.mxu0 0
    %198 = vmatmul.mubr.bf16.gmra.mxu0 %v58
    %v199 = vpop.f32.mrf.mxu0
    %v200 = vadd.f32 0.0, %v199
    %v201 = vpop.f32.mrf.mxu0
    %v202 = vpop.f32.mrf.mxu0
    %v203 = vadd.f32 0.0, %v202
    %v204 = vpop.f32.mrf.mxu0
    %205 = vmatprep.mubr.bf16.mxu0 0
    %206 = vmatmul.mubr.bf16.gmra.mxu0 %v59
    %v207 = vpop.f32.mrf.mxu0
    %v208 = vadd.f32 0.0, %v207
    %v209 = vpop.f32.mrf.mxu0
    %v210 = vpop.f32.mrf.mxu0
    %v211 = vadd.f32 0.0, %v210
    %v212 = vpop.f32.mrf.mxu0
    %213 = vmatprep.mubr.bf16.mxu0 0
    %214 = vmatmul.mubr.bf16.gmra.mxu0 %v60
    %v215 = vpop.f32.mrf.mxu0
    %v216 = vadd.f32 0.0, %v215
    %v217 = vpop.f32.mrf.mxu0
    %v218 = vpop.f32.mrf.mxu0
    %v219 = vadd.f32 0.0, %v218
    %v220 = vpop.f32.mrf.mxu0
    %221 = vdwg.mxu0
    %v222 = vld [vmem:[%s2] sm:$0x1]
    %v223 = vld [vmem:[%s3] sm:$0x1]
    %vm224 = vcmask 261120
    %v225 = vsel %vm224, %v160, 0.0
    %v226 = vsel %vm224, %v163, 0.0
    %v227 = vadd.f32 %v225, %v226
    %v228 = vsel %vm224, %v168, 0.0
    %v229 = vadd.f32 %v227, %v228
    %v230 = vsel %vm224, %v171, 0.0
    %v231 = vadd.f32 %v229, %v230
    %v232 = vsel %vm224, %v176, 0.0
    %v233 = vadd.f32 %v231, %v232
    %v234 = vsel %vm224, %v179, 0.0
    %v235 = vadd.f32 %v233, %v234
    %v236 = vsel %vm224, %v184, 0.0
    %v237 = vadd.f32 %v235, %v236
    %v238 = vsel %vm224, %v187, 0.0
    %v239 = vadd.f32 %v237, %v238
    %v240 = vsel %vm224, %v192, 0.0
    %v241 = vadd.f32 %v239, %v240
    %v242 = vsel %vm224, %v195, 0.0
    %v243 = vadd.f32 %v241, %v242
    %v244 = vsel %vm224, %v200, 0.0
    %v245 = vadd.f32 %v243, %v244
    %v246 = vsel %vm224, %v203, 0.0
    %v247 = vadd.f32 %v245, %v246
    %v248 = vsel %vm224, %v208, 0.0
    %v249 = vadd.f32 %v247, %v248
    %v250 = vsel %vm224, %v211, 0.0
    %v251 = vadd.f32 %v249, %v250
    %v252 = vsel %vm224, %v216, 0.0
    %v253 = vadd.f32 %v251, %v252
    %v254 = vsel %vm224, %v219, 0.0
    %v255 = vadd.f32 %v253, %v254
    %v256 = vrot.slane %v255, 4
    %v257 = vadd.f32 %v255, %v256
    %v258 = vrot.slane %v257, 2
    %v259 = vadd.f32 %v257, %v258
    %v260 = vrot.slane %v259, 1
    %v261 = vadd.f32 %v259, %v260
    %v262 = vmul.f32 %v160, %v160
    %v263 = vmul.f32 %v163, %v163
    %v264 = vmul.f32 %v168, %v168
    %v265 = vmul.f32 %v171, %v171
    %v266 = vmul.f32 %v176, %v176
    %v267 = vmul.f32 %v179, %v179
    %v268 = vmul.f32 %v184, %v184
    %v269 = vmul.f32 %v187, %v187
    %v270 = vmul.f32 %v192, %v192
    %v271 = vmul.f32 %v195, %v195
    %v272 = vmul.f32 %v200, %v200
    %v273 = vmul.f32 %v203, %v203
    %v274 = vmul.f32 %v208, %v208
    %v275 = vmul.f32 %v211, %v211
    %v276 = vmul.f32 %v216, %v216
    %v277 = vmul.f32 %v219, %v219
    %v278 = vsel %vm224, %v262, 0.0
    %v279 = vsel %vm224, %v263, 0.0
    %v280 = vadd.f32 %v278, %v279
    %v281 = vsel %vm224, %v264, 0.0
    %v282 = vadd.f32 %v280, %v281
    %v283 = vsel %vm224, %v265, 0.0
    %v284 = vadd.f32 %v282, %v283
    %v285 = vsel %vm224, %v266, 0.0
    %v286 = vadd.f32 %v284, %v285
    %v287 = vsel %vm224, %v267, 0.0
    %v288 = vadd.f32 %v286, %v287
    %v289 = vsel %vm224, %v268, 0.0
    %v290 = vadd.f32 %v288, %v289
    %v291 = vsel %vm224, %v269, 0.0
    %v292 = vadd.f32 %v290, %v291
    %v293 = vsel %vm224, %v270, 0.0
    %v294 = vadd.f32 %v292, %v293
    %v295 = vsel %vm224, %v271, 0.0
    %v296 = vadd.f32 %v294, %v295
    %v297 = vsel %vm224, %v272, 0.0
    %v298 = vadd.f32 %v296, %v297
    %v299 = vsel %vm224, %v273, 0.0
    %v300 = vadd.f32 %v298, %v299
    %v301 = vsel %vm224, %v274, 0.0
    %v302 = vadd.f32 %v300, %v301
    %v303 = vsel %vm224, %v275, 0.0
    %v304 = vadd.f32 %v302, %v303
    %v305 = vsel %vm224, %v276, 0.0
    %v306 = vadd.f32 %v304, %v305
    %v307 = vsel %vm224, %v277, 0.0
    %v308 = vadd.f32 %v306, %v307
    %v309 = vrot.slane %v308, 4
    %v310 = vadd.f32 %v308, %v309
    %v311 = vrot.slane %v310, 2
    %v312 = vadd.f32 %v310, %v311
    %v313 = vrot.slane %v312, 1
    %v314 = vadd.f32 %v312, %v313
    %v315 = vmul.f32 %v261, 0.0078125
    %v316 = vmul.f32 %v314, 0.0078125
    %v317 = vmul.f32 %v315, %v315
    %v318 = vsub.f32 %v316, %v317
    %v319 = vmax.f32 %v318, 0.0
    %v320 = vadd.f32 %v319, 1e-05
    %v321 = vrsqrt.pop %v320
    %v322 = vmul.f32 %v222, %v321
    %v323 = vmul.f32 %v315, %v322
    %v324 = vsub.f32 %v223, %v323
    %v326 = vlaneseq
    %v327 = vshrl.u32 %v326, 7
    %v328 = vsub.s32 0, %v327
    %v329 = vrot.slane %v322, %v328
    %v331 = vmul.f32 %v160, %v329
    %v332 = vmul.f32 %v163, %v329
    %v333 = vmul.f32 %v168, %v329
    %v334 = vmul.f32 %v171, %v329
    %v335 = vmul.f32 %v176, %v329
    %v336 = vmul.f32 %v179, %v329
    %v337 = vmul.f32 %v184, %v329
    %v338 = vmul.f32 %v187, %v329
    %v339 = vmul.f32 %v192, %v329
    %v340 = vmul.f32 %v195, %v329
    %v341 = vmul.f32 %v200, %v329
    %v342 = vmul.f32 %v203, %v329
    %v343 = vmul.f32 %v208, %v329
    %v344 = vmul.f32 %v211, %v329
    %v345 = vmul.f32 %v216, %v329
    %v346 = vmul.f32 %v219, %v329
    %v348 = vlaneseq
    %v349 = vshrl.u32 %v348, 7
    %v350 = vsub.s32 0, %v349
    %v351 = vrot.slane %v324, %v350
    %v353 = vadd.f32 %v331, %v351
    %v354 = vadd.f32 %v332, %v351
    %v355 = vadd.f32 %v333, %v351
    %v356 = vadd.f32 %v334, %v351
    %v357 = vadd.f32 %v335, %v351
    %v358 = vadd.f32 %v336, %v351
    %v359 = vadd.f32 %v337, %v351
    %v360 = vadd.f32 %v338, %v351
    %v361 = vadd.f32 %v339, %v351
    %v362 = vadd.f32 %v340, %v351
    %v363 = vadd.f32 %v341, %v351
    %v364 = vadd.f32 %v342, %v351
    %v365 = vadd.f32 %v343, %v351
    %v366 = vadd.f32 %v344, %v351
    %v367 = vadd.f32 %v345, %v351
    %v368 = vadd.f32 %v346, %v351
    %v369 = vmax.f32 %v353, 0.0
    %v370 = vmax.f32 %v354, 0.0
    %v371 = vmax.f32 %v355, 0.0
    %v372 = vmax.f32 %v356, 0.0
    %v373 = vmax.f32 %v357, 0.0
    %v374 = vmax.f32 %v358, 0.0
    %v375 = vmax.f32 %v359, 0.0
    %v376 = vmax.f32 %v360, 0.0
    %v377 = vmax.f32 %v361, 0.0
    %v378 = vmax.f32 %v362, 0.0
    %v379 = vmax.f32 %v363, 0.0
    %v380 = vmax.f32 %v364, 0.0
    %v381 = vmax.f32 %v365, 0.0
    %v382 = vmax.f32 %v366, 0.0
    %v383 = vmax.f32 %v367, 0.0
    %v384 = vmax.f32 %v368, 0.0
    %385 = vst.msk [vmem:[#allocation2] sm:$0xff] %vm224, 0.0
    %vm386 = vcmask 254976
    %387 = vst.msk [vmem:[#allocation2 + $0x8] sm:$0x3] %vm386, 0.0
    %388 = vst.msk [vmem:[#allocation2 + $0xa0] sm:$0xff] %vm224, 0.0
    %389 = vst.msk [vmem:[#allocation2 + $0xa8] sm:$0x3] %vm386, 0.0
    %s390 = scalar_lea.vmem [#allocation2], 144
    %391 = vst.msk [vmem:[%s390] sm:$0xff] %vm224, 0.0
    %392 = vst.msk [vmem:[%s390 + $0x8] sm:$0x3] %vm386, 0.0
    %393 = vst.msk [vmem:[%s390 + $0xa0] sm:$0xff] %vm224, 0.0
    %394 = vst.msk [vmem:[%s390 + $0xa8] sm:$0x3] %vm386, 0.0
    %vm395 = vcmask 253952
    %396 = vst.msk [vmem:[#allocation2] sm:$0x1] %vm395, 0.0
    %397 = vst.msk [vmem:[#allocation2 + $0x10] sm:$0x1] %vm395, 0.0
    %398 = vst.msk [vmem:[#allocation2 + $0x20] sm:$0x1] %vm395, 0.0
    %399 = vst.msk [vmem:[#allocation2 + $0x30] sm:$0x1] %vm395, 0.0
    %400 = vst.msk [vmem:[#allocation2 + $0x40] sm:$0x1] %vm395, 0.0
    %401 = vst.msk [vmem:[#allocation2 + $0x50] sm:$0x1] %vm395, 0.0
    %402 = vst.msk [vmem:[#allocation2 + $0x60] sm:$0x1] %vm395, 0.0
    %403 = vst.msk [vmem:[#allocation2 + $0x70] sm:$0x1] %vm395, 0.0
    %404 = vst.msk [vmem:[#allocation2 + $0x80] sm:$0x1] %vm395, 0.0
    %405 = vst.msk [vmem:[#allocation2 + $0x90] sm:$0x1] %vm395, 0.0
    %406 = vst.msk [vmem:[#allocation2 + $0xa0] sm:$0x1] %vm395, 0.0
    %407 = vst.msk [vmem:[#allocation2 + $0xb0] sm:$0x1] %vm395, 0.0
    %408 = vst.msk [vmem:[#allocation2 + $0xc0] sm:$0x1] %vm395, 0.0
    %409 = vst.msk [vmem:[#allocation2 + $0xd0] sm:$0x1] %vm395, 0.0
    %410 = vst.msk [vmem:[#allocation2 + $0xe0] sm:$0x1] %vm395, 0.0
    %411 = vst.msk [vmem:[#allocation2 + $0xf0] sm:$0x1] %vm395, 0.0
    %412 = vst.msk [vmem:[#allocation2 + $0x100] sm:$0x1] %vm395, 0.0
    %413 = vst.msk [vmem:[#allocation2 + $0x110] sm:$0x1] %vm395, 0.0
    %414 = vst.msk [vmem:[#allocation2 + $0x120] sm:$0x1] %vm395, 0.0
    %415 = vst.msk [vmem:[#allocation2 + $0x130] sm:$0x1] %vm395, 0.0
    %416 = vst.msk [vmem:[#allocation2 + $0x9] sm:$0x1] %vm395, 0.0
    %417 = vst.msk [vmem:[#allocation2 + $0x19] sm:$0x1] %vm395, 0.0
    %418 = vst.msk [vmem:[#allocation2 + $0x29] sm:$0x1] %vm395, 0.0
    %419 = vst.msk [vmem:[#allocation2 + $0x39] sm:$0x1] %vm395, 0.0
    %420 = vst.msk [vmem:[#allocation2 + $0x49] sm:$0x1] %vm395, 0.0
    %421 = vst.msk [vmem:[#allocation2 + $0x59] sm:$0x1] %vm395, 0.0
    %422 = vst.msk [vmem:[#allocation2 + $0x69] sm:$0x1] %vm395, 0.0
    %423 = vst.msk [vmem:[#allocation2 + $0x79] sm:$0x1] %vm395, 0.0
    %424 = vst.msk [vmem:[#allocation2 + $0x89] sm:$0x1] %vm395, 0.0
    %425 = vst.msk [vmem:[#allocation2 + $0x99] sm:$0x1] %vm395, 0.0
    %426 = vst.msk [vmem:[#allocation2 + $0xa9] sm:$0x1] %vm395, 0.0
    %427 = vst.msk [vmem:[#allocation2 + $0xb9] sm:$0x1] %vm395, 0.0
    %428 = vst.msk [vmem:[#allocation2 + $0xc9] sm:$0x1] %vm395, 0.0
    %429 = vst.msk [vmem:[#allocation2 + $0xd9] sm:$0x1] %vm395, 0.0
    %430 = vst.msk [vmem:[#allocation2 + $0xe9] sm:$0x1] %vm395, 0.0
    %431 = vst.msk [vmem:[#allocation2 + $0xf9] sm:$0x1] %vm395, 0.0
    %432 = vst.msk [vmem:[#allocation2 + $0x109] sm:$0x1] %vm395, 0.0
    %433 = vst.msk [vmem:[#allocation2 + $0x119] sm:$0x1] %vm395, 0.0
    %434 = vst.msk [vmem:[#allocation2 + $0x129] sm:$0x1] %vm395, 0.0
    %435 = vst.msk [vmem:[#allocation2 + $0x139] sm:$0x1] %vm395, 0.0
    %s436 = scalar_lea.vmem [#allocation2], 16
    %437 = vst.msk [vmem:[%s436 + $0x1] sm:$0xff] %vm224, %v369
    %438 = vst.msk [vmem:[%s436 + $0x11] sm:$0xff] %vm224, %v370
    %439 = vst.msk [vmem:[%s436 + $0x21] sm:$0xff] %vm224, %v371
    %440 = vst.msk [vmem:[%s436 + $0x31] sm:$0xff] %vm224, %v372
    %441 = vst.msk [vmem:[%s436 + $0x41] sm:$0xff] %vm224, %v373
    %442 = vst.msk [vmem:[%s436 + $0x51] sm:$0xff] %vm224, %v374
    %443 = vst.msk [vmem:[%s436 + $0x61] sm:$0xff] %vm224, %v375
    %444 = vst.msk [vmem:[%s436 + $0x71] sm:$0xff] %vm224, %v376
    %445 = vst.msk [vmem:[%s436 + $0xa1] sm:$0xff] %vm224, %v377
    %446 = vst.msk [vmem:[%s436 + $0xb1] sm:$0xff] %vm224, %v378
    %447 = vst.msk [vmem:[%s436 + $0xc1] sm:$0xff] %vm224, %v379
    %448 = vst.msk [vmem:[%s436 + $0xd1] sm:$0xff] %vm224, %v380
    %449 = vst.msk [vmem:[%s436 + $0xe1] sm:$0xff] %vm224, %v381
    %450 = vst.msk [vmem:[%s436 + $0xf1] sm:$0xff] %vm224, %v382
    %451 = vst.msk [vmem:[%s436 + $0x101] sm:$0xff] %vm224, %v383
    %452 = vst.msk [vmem:[%s436 + $0x111] sm:$0xff] %vm224, %v384
    %v453 = vld [vmem:[#allocation2] sm:$0xff]
    %v454 = vld [vmem:[#allocation2 + $0x10] sm:$0xff]
    %v455 = vld [vmem:[#allocation2 + $0x20] sm:$0xff]
    %v456 = vld [vmem:[#allocation2 + $0x30] sm:$0xff]
    %v457 = vld [vmem:[#allocation2 + $0x40] sm:$0xff]
    %v458 = vld [vmem:[#allocation2 + $0x50] sm:$0xff]
    %v459 = vld [vmem:[#allocation2 + $0x60] sm:$0xff]
    %v460 = vld [vmem:[#allocation2 + $0x70] sm:$0xff]
    %v461 = vld [vmem:[#allocation2 + $0xa0] sm:$0xff]
    %v462 = vld [vmem:[#allocation2 + $0xb0] sm:$0xff]
    %v463 = vld [vmem:[#allocation2 + $0xc0] sm:$0xff]
    %v464 = vld [vmem:[#allocation2 + $0xd0] sm:$0xff]
    %v465 = vld [vmem:[#allocation2 + $0xe0] sm:$0xff]
    %v466 = vld [vmem:[#allocation2 + $0xf0] sm:$0xff]
    %v467 = vld [vmem:[#allocation2 + $0x100] sm:$0xff]
    %v468 = vld [vmem:[#allocation2 + $0x110] sm:$0xff]
    %v469 = vpack.c.bf16 %v454, %v453
    %v470 = vpack.c.bf16 %v456, %v455
    %v471 = vpack.c.bf16 %v458, %v457
    %v472 = vpack.c.bf16 %v460, %v459
    %v473 = vpack.c.bf16 %v462, %v461
    %v474 = vpack.c.bf16 %v464, %v463
    %v475 = vpack.c.bf16 %v466, %v465
    %v476 = vpack.c.bf16 %v468, %v467
    %v485 = vunpack.c.l.b16 %v469
    %v486 = vunpack.c.h.b16 %v469
    %v487 = vunpack.c.l.b16 %v470
    %v488 = vunpack.c.h.b16 %v470
    %v489 = vunpack.c.l.b16 %v471
    %v490 = vunpack.c.h.b16 %v471
    %v491 = vunpack.c.l.b16 %v472
    %v492 = vunpack.c.h.b16 %v472
    %v493 = vunpack.c.l.b16 %v473
    %v494 = vunpack.c.h.b16 %v473
    %v495 = vunpack.c.l.b16 %v474
    %v496 = vunpack.c.h.b16 %v474
    %v497 = vunpack.c.l.b16 %v475
    %v498 = vunpack.c.h.b16 %v475
    %v499 = vunpack.c.l.b16 %v476
    %v500 = vunpack.c.h.b16 %v476
    %v501 = vpack.c.b16 %v485, %v485
    %v502 = vpack.c.b16 %v486, %v486
    %v503 = vpack.c.b16 %v487, %v487
    %v504 = vpack.c.b16 %v488, %v488
    %v505 = vpack.c.b16 %v489, %v489
    %v506 = vpack.c.b16 %v490, %v490
    %v507 = vpack.c.b16 %v491, %v491
    %v508 = vpack.c.b16 %v492, %v492
    %v509 = vpack.c.b16 %v493, %v493
    %v510 = vpack.c.b16 %v494, %v494
    %v511 = vpack.c.b16 %v495, %v495
    %v512 = vpack.c.b16 %v496, %v496
    %v513 = vpack.c.b16 %v497, %v497
    %v514 = vpack.c.b16 %v498, %v498
    %v515 = vpack.c.b16 %v499, %v499
    %v516 = vpack.c.b16 %v500, %v500
    %vm533 = vcmask 257024
    %534 = vst.msk [vmem:[#allocation3] sm:$0xf] %vm533, %v501
    %535 = vst.msk [vmem:[#allocation3 + $0xc] sm:$0xf] %vm533, %v502
    %536 = vst.msk [vmem:[#allocation3 + $0x18] sm:$0xf] %vm533, %v503
    %537 = vst.msk [vmem:[#allocation3 + $0x24] sm:$0xf] %vm533, %v504
    %538 = vst.msk [vmem:[#allocation3 + $0x30] sm:$0xf] %vm533, %v505
    %539 = vst.msk [vmem:[#allocation3 + $0x3c] sm:$0xf] %vm533, %v506
    %540 = vst.msk [vmem:[#allocation3 + $0x48] sm:$0xf] %vm533, %v507
    %541 = vst.msk [vmem:[#allocation3 + $0x54] sm:$0xf] %vm533, %v508
    %542 = vst.msk [vmem:[#allocation3 + $0x60] sm:$0xf] %vm533, %v509
    %543 = vst.msk [vmem:[#allocation3 + $0x6c] sm:$0xf] %vm533, %v510
    %544 = vst.msk [vmem:[#allocation3 + $0x78] sm:$0xf] %vm533, %v511
    %545 = vst.msk [vmem:[#allocation3 + $0x84] sm:$0xf] %vm533, %v512
    %546 = vst.msk [vmem:[#allocation3 + $0x90] sm:$0xf] %vm533, %v513
    %547 = vst.msk [vmem:[#allocation3 + $0x9c] sm:$0xf] %vm533, %v514
    %548 = vst.msk [vmem:[#allocation3 + $0xa8] sm:$0xf] %vm533, %v515
    %549 = vst.msk [vmem:[#allocation3 + $0xb4] sm:$0xf] %vm533, %v516
    %v550 = vld [vmem:[#allocation2 + $0x1] sm:$0xff]
    %v551 = vld [vmem:[#allocation2 + $0x11] sm:$0xff]
    %v552 = vld [vmem:[#allocation2 + $0x21] sm:$0xff]
    %v553 = vld [vmem:[#allocation2 + $0x31] sm:$0xff]
    %v554 = vld [vmem:[#allocation2 + $0x41] sm:$0xff]
    %v555 = vld [vmem:[#allocation2 + $0x51] sm:$0xff]
    %v556 = vld [vmem:[#allocation2 + $0x61] sm:$0xff]
    %v557 = vld [vmem:[#allocation2 + $0x71] sm:$0xff]
    %v558 = vld [vmem:[#allocation2 + $0xa1] sm:$0xff]
    %v559 = vld [vmem:[#allocation2 + $0xb1] sm:$0xff]
    %v560 = vld [vmem:[#allocation2 + $0xc1] sm:$0xff]
    %v561 = vld [vmem:[#allocation2 + $0xd1] sm:$0xff]
    %v562 = vld [vmem:[#allocation2 + $0xe1] sm:$0xff]
    %v563 = vld [vmem:[#allocation2 + $0xf1] sm:$0xff]
    %v564 = vld [vmem:[#allocation2 + $0x101] sm:$0xff]
    %v565 = vld [vmem:[#allocation2 + $0x111] sm:$0xff]
    %v566 = vpack.c.bf16 %v551, %v550
    %v567 = vpack.c.bf16 %v553, %v552
    %v568 = vpack.c.bf16 %v555, %v554
    %v569 = vpack.c.bf16 %v557, %v556
    %v570 = vpack.c.bf16 %v559, %v558
    %v571 = vpack.c.bf16 %v561, %v560
    %v572 = vpack.c.bf16 %v563, %v562
    %v573 = vpack.c.bf16 %v565, %v564
    %v582 = vunpack.c.l.b16 %v566
    %v583 = vunpack.c.h.b16 %v566
    %v584 = vunpack.c.l.b16 %v567
    %v585 = vunpack.c.h.b16 %v567
    %v586 = vunpack.c.l.b16 %v568
    %v587 = vunpack.c.h.b16 %v568
    %v588 = vunpack.c.l.b16 %v569
    %v589 = vunpack.c.h.b16 %v569
    %v590 = vunpack.c.l.b16 %v570
    %v591 = vunpack.c.h.b16 %v570
    %v592 = vunpack.c.l.b16 %v571
    %v593 = vunpack.c.h.b16 %v571
    %v594 = vunpack.c.l.b16 %v572
    %v595 = vunpack.c.h.b16 %v572
    %v596 = vunpack.c.l.b16 %v573
    %v597 = vunpack.c.h.b16 %v573
    %v598 = vpack.c.b16 %v582, %v582
    %v599 = vpack.c.b16 %v583, %v583
    %v600 = vpack.c.b16 %v584, %v584
    %v601 = vpack.c.b16 %v585, %v585
    %v602 = vpack.c.b16 %v586, %v586
    %v603 = vpack.c.b16 %v587, %v587
    %v604 = vpack.c.b16 %v588, %v588
    %v605 = vpack.c.b16 %v589, %v589
    %v606 = vpack.c.b16 %v590, %v590
    %v607 = vpack.c.b16 %v591, %v591
    %v608 = vpack.c.b16 %v592, %v592
    %v609 = vpack.c.b16 %v593, %v593
    %v610 = vpack.c.b16 %v594, %v594
    %v611 = vpack.c.b16 %v595, %v595
    %v612 = vpack.c.b16 %v596, %v596
    %v613 = vpack.c.b16 %v597, %v597
    %614 = vrot.lane.b32.xlu0 %v598, 32
    %v615 = vpop.permute.xlu0 %614
    %616 = vrot.lane.b32.xlu0 %v599, 32
    %v617 = vpop.permute.xlu0 %616
    %618 = vrot.lane.b32.xlu0 %v600, 32
    %v619 = vpop.permute.xlu0 %618
    %620 = vrot.lane.b32.xlu0 %v601, 32
    %v621 = vpop.permute.xlu0 %620
    %622 = vrot.lane.b32.xlu0 %v602, 32
    %v623 = vpop.permute.xlu0 %622
    %624 = vrot.lane.b32.xlu0 %v603, 32
    %v625 = vpop.permute.xlu0 %624
    %626 = vrot.lane.b32.xlu0 %v604, 32
    %v627 = vpop.permute.xlu0 %626
    %628 = vrot.lane.b32.xlu0 %v605, 32
    %v629 = vpop.permute.xlu0 %628
    %630 = vrot.lane.b32.xlu0 %v606, 32
    %v631 = vpop.permute.xlu0 %630
    %632 = vrot.lane.b32.xlu0 %v607, 32
    %v633 = vpop.permute.xlu0 %632
    %634 = vrot.lane.b32.xlu0 %v608, 32
    %v635 = vpop.permute.xlu0 %634
    %636 = vrot.lane.b32.xlu0 %v609, 32
    %v637 = vpop.permute.xlu0 %636
    %638 = vrot.lane.b32.xlu0 %v610, 32
    %v639 = vpop.permute.xlu0 %638
    %640 = vrot.lane.b32.xlu0 %v611, 32
    %v641 = vpop.permute.xlu0 %640
    %642 = vrot.lane.b32.xlu0 %v612, 32
    %v643 = vpop.permute.xlu0 %642
    %644 = vrot.lane.b32.xlu0 %v613, 32
    %v645 = vpop.permute.xlu0 %644
    %vm662 = vcmask 519424
    %663 = vst.msk [vmem:[#allocation3] sm:$0xf] %vm662, %v615
    %664 = vst.msk [vmem:[#allocation3 + $0xc] sm:$0xf] %vm662, %v617
    %665 = vst.msk [vmem:[#allocation3 + $0x18] sm:$0xf] %vm662, %v619
    %666 = vst.msk [vmem:[#allocation3 + $0x24] sm:$0xf] %vm662, %v621
    %667 = vst.msk [vmem:[#allocation3 + $0x30] sm:$0xf] %vm662, %v623
    %668 = vst.msk [vmem:[#allocation3 + $0x3c] sm:$0xf] %vm662, %v625
    %669 = vst.msk [vmem:[#allocation3 + $0x48] sm:$0xf] %vm662, %v627
    %670 = vst.msk [vmem:[#allocation3 + $0x54] sm:$0xf] %vm662, %v629
    %671 = vst.msk [vmem:[#allocation3 + $0x60] sm:$0xf] %vm662, %v631
    %672 = vst.msk [vmem:[#allocation3 + $0x6c] sm:$0xf] %vm662, %v633
    %673 = vst.msk [vmem:[#allocation3 + $0x78] sm:$0xf] %vm662, %v635
    %674 = vst.msk [vmem:[#allocation3 + $0x84] sm:$0xf] %vm662, %v637
    %675 = vst.msk [vmem:[#allocation3 + $0x90] sm:$0xf] %vm662, %v639
    %676 = vst.msk [vmem:[#allocation3 + $0x9c] sm:$0xf] %vm662, %v641
    %677 = vst.msk [vmem:[#allocation3 + $0xa8] sm:$0xf] %vm662, %v643
    %678 = vst.msk [vmem:[#allocation3 + $0xb4] sm:$0xf] %vm662, %v645
    %v679 = vld [vmem:[#allocation2 + $0x2] sm:$0xff]
    %v680 = vld [vmem:[#allocation2 + $0x12] sm:$0xff]
    %v681 = vld [vmem:[#allocation2 + $0x22] sm:$0xff]
    %v682 = vld [vmem:[#allocation2 + $0x32] sm:$0xff]
    %v683 = vld [vmem:[#allocation2 + $0x42] sm:$0xff]
    %v684 = vld [vmem:[#allocation2 + $0x52] sm:$0xff]
    %v685 = vld [vmem:[#allocation2 + $0x62] sm:$0xff]
    %v686 = vld [vmem:[#allocation2 + $0x72] sm:$0xff]
    %v687 = vld [vmem:[#allocation2 + $0xa2] sm:$0xff]
    %v688 = vld [vmem:[#allocation2 + $0xb2] sm:$0xff]
    %v689 = vld [vmem:[#allocation2 + $0xc2] sm:$0xff]
    %v690 = vld [vmem:[#allocation2 + $0xd2] sm:$0xff]
    %v691 = vld [vmem:[#allocation2 + $0xe2] sm:$0xff]
    %v692 = vld [vmem:[#allocation2 + $0xf2] sm:$0xff]
    %v693 = vld [vmem:[#allocation2 + $0x102] sm:$0xff]
    %v694 = vld [vmem:[#allocation2 + $0x112] sm:$0xff]
    %v695 = vpack.c.bf16 %v680, %v679
    %v696 = vpack.c.bf16 %v682, %v681
    %v697 = vpack.c.bf16 %v684, %v683
    %v698 = vpack.c.bf16 %v686, %v685
    %v699 = vpack.c.bf16 %v688, %v687
    %v700 = vpack.c.bf16 %v690, %v689
    %v701 = vpack.c.bf16 %v692, %v691
    %v702 = vpack.c.bf16 %v694, %v693
    %v711 = vunpack.c.l.b16 %v695
    %v712 = vunpack.c.h.b16 %v695
    %v713 = vunpack.c.l.b16 %v696
    %v714 = vunpack.c.h.b16 %v696
    %v715 = vunpack.c.l.b16 %v697
    %v716 = vunpack.c.h.b16 %v697
    %v717 = vunpack.c.l.b16 %v698
    %v718 = vunpack.c.h.b16 %v698
    %v719 = vunpack.c.l.b16 %v699
    %v720 = vunpack.c.h.b16 %v699
    %v721 = vunpack.c.l.b16 %v700
    %v722 = vunpack.c.h.b16 %v700
    %v723 = vunpack.c.l.b16 %v701
    %v724 = vunpack.c.h.b16 %v701
    %v725 = vunpack.c.l.b16 %v702
    %v726 = vunpack.c.h.b16 %v702
    %v727 = vpack.c.b16 %v711, %v711
    %v728 = vpack.c.b16 %v712, %v712
    %v729 = vpack.c.b16 %v713, %v713
    %v730 = vpack.c.b16 %v714, %v714
    %v731 = vpack.c.b16 %v715, %v715
    %v732 = vpack.c.b16 %v716, %v716
    %v733 = vpack.c.b16 %v717, %v717
    %v734 = vpack.c.b16 %v718, %v718
    %v735 = vpack.c.b16 %v719, %v719
    %v736 = vpack.c.b16 %v720, %v720
    %v737 = vpack.c.b16 %v721, %v721
    %v738 = vpack.c.b16 %v722, %v722
    %v739 = vpack.c.b16 %v723, %v723
    %v740 = vpack.c.b16 %v724, %v724
    %v741 = vpack.c.b16 %v725, %v725
    %v742 = vpack.c.b16 %v726, %v726
    %743 = vrot.lane.b32.xlu0 %v727, 64
    %v744 = vpop.permute.xlu0 %743
    %745 = vrot.lane.b32.xlu0 %v728, 64
    %v746 = vpop.permute.xlu0 %745
    %747 = vrot.lane.b32.xlu0 %v729, 64
    %v748 = vpop.permute.xlu0 %747
    %749 = vrot.lane.b32.xlu0 %v730, 64
    %v750 = vpop.permute.xlu0 %749
    %751 = vrot.lane.b32.xlu0 %v731, 64
    %v752 = vpop.permute.xlu0 %751
    %753 = vrot.lane.b32.xlu0 %v732, 64
    %v754 = vpop.permute.xlu0 %753
    %755 = vrot.lane.b32.xlu0 %v733, 64
    %v756 = vpop.permute.xlu0 %755
    %757 = vrot.lane.b32.xlu0 %v734, 64
    %v758 = vpop.permute.xlu0 %757
    %759 = vrot.lane.b32.xlu0 %v735, 64
    %v760 = vpop.permute.xlu0 %759
    %761 = vrot.lane.b32.xlu0 %v736, 64
    %v762 = vpop.permute.xlu0 %761
    %763 = vrot.lane.b32.xlu0 %v737, 64
    %v764 = vpop.permute.xlu0 %763
    %765 = vrot.lane.b32.xlu0 %v738, 64
    %v766 = vpop.permute.xlu0 %765
    %767 = vrot.lane.b32.xlu0 %v739, 64
    %v768 = vpop.permute.xlu0 %767
    %769 = vrot.lane.b32.xlu0 %v740, 64
    %v770 = vpop.permute.xlu0 %769
    %771 = vrot.lane.b32.xlu0 %v741, 64
    %v772 = vpop.permute.xlu0 %771
    %773 = vrot.lane.b32.xlu0 %v742, 64
    %v774 = vpop.permute.xlu0 %773
    %vm791 = vcmask 781824
    %792 = vst.msk [vmem:[#allocation3] sm:$0xf] %vm791, %v744
    %793 = vst.msk [vmem:[#allocation3 + $0xc] sm:$0xf] %vm791, %v746
    %794 = vst.msk [vmem:[#allocation3 + $0x18] sm:$0xf] %vm791, %v748
    %795 = vst.msk [vmem:[#allocation3 + $0x24] sm:$0xf] %vm791, %v750
    %796 = vst.msk [vmem:[#allocation3 + $0x30] sm:$0xf] %vm791, %v752
    %797 = vst.msk [vmem:[#allocation3 + $0x3c] sm:$0xf] %vm791, %v754
    %798 = vst.msk [vmem:[#allocation3 + $0x48] sm:$0xf] %vm791, %v756
    %799 = vst.msk [vmem:[#allocation3 + $0x54] sm:$0xf] %vm791, %v758
    %800 = vst.msk [vmem:[#allocation3 + $0x60] sm:$0xf] %vm791, %v760
    %801 = vst.msk [vmem:[#allocation3 + $0x6c] sm:$0xf] %vm791, %v762
    %802 = vst.msk [vmem:[#allocation3 + $0x78] sm:$0xf] %vm791, %v764
    %803 = vst.msk [vmem:[#allocation3 + $0x84] sm:$0xf] %vm791, %v766
    %804 = vst.msk [vmem:[#allocation3 + $0x90] sm:$0xf] %vm791, %v768
    %805 = vst.msk [vmem:[#allocation3 + $0x9c] sm:$0xf] %vm791, %v770
    %806 = vst.msk [vmem:[#allocation3 + $0xa8] sm:$0xf] %vm791, %v772
    %807 = vst.msk [vmem:[#allocation3 + $0xb4] sm:$0xf] %vm791, %v774
    %v808 = vld [vmem:[%s436] sm:$0xff]
    %v809 = vld [vmem:[%s436 + $0x10] sm:$0xff]
    %v810 = vld [vmem:[%s436 + $0x20] sm:$0xff]
    %v811 = vld [vmem:[%s436 + $0x30] sm:$0xff]
    %v812 = vld [vmem:[%s436 + $0x40] sm:$0xff]
    %v813 = vld [vmem:[%s436 + $0x50] sm:$0xff]
    %v814 = vld [vmem:[%s436 + $0x60] sm:$0xff]
    %v815 = vld [vmem:[%s436 + $0x70] sm:$0xff]
    %v816 = vld [vmem:[%s436 + $0xa0] sm:$0xff]
    %v817 = vld [vmem:[%s436 + $0xb0] sm:$0xff]
    %v818 = vld [vmem:[%s436 + $0xc0] sm:$0xff]
    %v819 = vld [vmem:[%s436 + $0xd0] sm:$0xff]
    %v820 = vld [vmem:[%s436 + $0xe0] sm:$0xff]
    %v821 = vld [vmem:[%s436 + $0xf0] sm:$0xff]
    %v822 = vld [vmem:[%s436 + $0x100] sm:$0xff]
    %v823 = vld [vmem:[%s436 + $0x110] sm:$0xff]
    %v824 = vpack.c.bf16 %v809, %v808
    %v825 = vpack.c.bf16 %v811, %v810
    %v826 = vpack.c.bf16 %v813, %v812
    %v827 = vpack.c.bf16 %v815, %v814
    %v828 = vpack.c.bf16 %v817, %v816
    %v829 = vpack.c.bf16 %v819, %v818
    %v830 = vpack.c.bf16 %v821, %v820
    %v831 = vpack.c.bf16 %v823, %v822
    %v840 = vunpack.c.l.b16 %v824
    %v841 = vunpack.c.h.b16 %v824
    %v842 = vunpack.c.l.b16 %v825
    %v843 = vunpack.c.h.b16 %v825
    %v844 = vunpack.c.l.b16 %v826
    %v845 = vunpack.c.h.b16 %v826
    %v846 = vunpack.c.l.b16 %v827
    %v847 = vunpack.c.h.b16 %v827
    %v848 = vunpack.c.l.b16 %v828
    %v849 = vunpack.c.h.b16 %v828
    %v850 = vunpack.c.l.b16 %v829
    %v851 = vunpack.c.h.b16 %v829
    %v852 = vunpack.c.l.b16 %v830
    %v853 = vunpack.c.h.b16 %v830
    %v854 = vunpack.c.l.b16 %v831
    %v855 = vunpack.c.h.b16 %v831
    %v856 = vpack.c.b16 %v840, %v840
    %v857 = vpack.c.b16 %v841, %v841
    %v858 = vpack.c.b16 %v842, %v842
    %v859 = vpack.c.b16 %v843, %v843
    %v860 = vpack.c.b16 %v844, %v844
    %v861 = vpack.c.b16 %v845, %v845
    %v862 = vpack.c.b16 %v846, %v846
    %v863 = vpack.c.b16 %v847, %v847
    %v864 = vpack.c.b16 %v848, %v848
    %v865 = vpack.c.b16 %v849, %v849
    %v866 = vpack.c.b16 %v850, %v850
    %v867 = vpack.c.b16 %v851, %v851
    %v868 = vpack.c.b16 %v852, %v852
    %v869 = vpack.c.b16 %v853, %v853
    %v870 = vpack.c.b16 %v854, %v854
    %v871 = vpack.c.b16 %v855, %v855
    %872 = vrot.lane.b32.xlu0 %v856, 96
    %v873 = vpop.permute.xlu0 %872
    %874 = vrot.lane.b32.xlu0 %v857, 96
    %v875 = vpop.permute.xlu0 %874
    %876 = vrot.lane.b32.xlu0 %v858, 96
    %v877 = vpop.permute.xlu0 %876
    %878 = vrot.lane.b32.xlu0 %v859, 96
    %v879 = vpop.permute.xlu0 %878
    %880 = vrot.lane.b32.xlu0 %v860, 96
    %v881 = vpop.permute.xlu0 %880
    %882 = vrot.lane.b32.xlu0 %v861, 96
    %v883 = vpop.permute.xlu0 %882
    %884 = vrot.lane.b32.xlu0 %v862, 96
    %v885 = vpop.permute.xlu0 %884
    %886 = vrot.lane.b32.xlu0 %v863, 96
    %v887 = vpop.permute.xlu0 %886
    %888 = vrot.lane.b32.xlu0 %v864, 96
    %v889 = vpop.permute.xlu0 %888
    %890 = vrot.lane.b32.xlu0 %v865, 96
    %v891 = vpop.permute.xlu0 %890
    %892 = vrot.lane.b32.xlu0 %v866, 96
    %v893 = vpop.permute.xlu0 %892
    %894 = vrot.lane.b32.xlu0 %v867, 96
    %v895 = vpop.permute.xlu0 %894
    %896 = vrot.lane.b32.xlu0 %v868, 96
    %v897 = vpop.permute.xlu0 %896
    %898 = vrot.lane.b32.xlu0 %v869, 96
    %v899 = vpop.permute.xlu0 %898
    %900 = vrot.lane.b32.xlu0 %v870, 96
    %v901 = vpop.permute.xlu0 %900
    %902 = vrot.lane.b32.xlu0 %v871, 96
    %v903 = vpop.permute.xlu0 %902
    %vm920 = vcmask 1044224
    %921 = vst.msk [vmem:[#allocation3] sm:$0xf] %vm920, %v873
    %922 = vst.msk [vmem:[#allocation3 + $0xc] sm:$0xf] %vm920, %v875
    %923 = vst.msk [vmem:[#allocation3 + $0x18] sm:$0xf] %vm920, %v877
    %924 = vst.msk [vmem:[#allocation3 + $0x24] sm:$0xf] %vm920, %v879
    %925 = vst.msk [vmem:[#allocation3 + $0x30] sm:$0xf] %vm920, %v881
    %926 = vst.msk [vmem:[#allocation3 + $0x3c] sm:$0xf] %vm920, %v883
    %927 = vst.msk [vmem:[#allocation3 + $0x48] sm:$0xf] %vm920, %v885
    %928 = vst.msk [vmem:[#allocation3 + $0x54] sm:$0xf] %vm920, %v887
    %929 = vst.msk [vmem:[#allocation3 + $0x60] sm:$0xf] %vm920, %v889
    %930 = vst.msk [vmem:[#allocation3 + $0x6c] sm:$0xf] %vm920, %v891
    %931 = vst.msk [vmem:[#allocation3 + $0x78] sm:$0xf] %vm920, %v893
    %932 = vst.msk [vmem:[#allocation3 + $0x84] sm:$0xf] %vm920, %v895
    %933 = vst.msk [vmem:[#allocation3 + $0x90] sm:$0xf] %vm920, %v897
    %934 = vst.msk [vmem:[#allocation3 + $0x9c] sm:$0xf] %vm920, %v899
    %935 = vst.msk [vmem:[#allocation3 + $0xa8] sm:$0xf] %vm920, %v901
    %936 = vst.msk [vmem:[#allocation3 + $0xb4] sm:$0xf] %vm920, %v903
    %v937 = vld [vmem:[%s436 + $0x1] sm:$0xff]
    %v938 = vld [vmem:[%s436 + $0x11] sm:$0xff]
    %v939 = vld [vmem:[%s436 + $0x21] sm:$0xff]
    %v940 = vld [vmem:[%s436 + $0x31] sm:$0xff]
    %v941 = vld [vmem:[%s436 + $0x41] sm:$0xff]
    %v942 = vld [vmem:[%s436 + $0x51] sm:$0xff]
    %v943 = vld [vmem:[%s436 + $0x61] sm:$0xff]
    %v944 = vld [vmem:[%s436 + $0x71] sm:$0xff]
    %v945 = vld [vmem:[%s436 + $0xa1] sm:$0xff]
    %v946 = vld [vmem:[%s436 + $0xb1] sm:$0xff]
    %v947 = vld [vmem:[%s436 + $0xc1] sm:$0xff]
    %v948 = vld [vmem:[%s436 + $0xd1] sm:$0xff]
    %v949 = vld [vmem:[%s436 + $0xe1] sm:$0xff]
    %v950 = vld [vmem:[%s436 + $0xf1] sm:$0xff]
    %v951 = vld [vmem:[%s436 + $0x101] sm:$0xff]
    %v952 = vld [vmem:[%s436 + $0x111] sm:$0xff]
    %v953 = vpack.c.bf16 %v938, %v937
    %v954 = vpack.c.bf16 %v940, %v939
    %v955 = vpack.c.bf16 %v942, %v941
    %v956 = vpack.c.bf16 %v944, %v943
    %v957 = vpack.c.bf16 %v946, %v945
    %v958 = vpack.c.bf16 %v948, %v947
    %v959 = vpack.c.bf16 %v950, %v949
    %v960 = vpack.c.bf16 %v952, %v951
    %v969 = vunpack.c.l.b16 %v953
    %v970 = vunpack.c.h.b16 %v953
    %v971 = vunpack.c.l.b16 %v954
    %v972 = vunpack.c.h.b16 %v954
    %v973 = vunpack.c.l.b16 %v955
    %v974 = vunpack.c.h.b16 %v955
    %v975 = vunpack.c.l.b16 %v956
    %v976 = vunpack.c.h.b16 %v956
    %v977 = vunpack.c.l.b16 %v957
    %v978 = vunpack.c.h.b16 %v957
    %v979 = vunpack.c.l.b16 %v958
    %v980 = vunpack.c.h.b16 %v958
    %v981 = vunpack.c.l.b16 %v959
    %v982 = vunpack.c.h.b16 %v959
    %v983 = vunpack.c.l.b16 %v960
    %v984 = vunpack.c.h.b16 %v960
    %v985 = vpack.c.b16 %v969, %v969
    %v986 = vpack.c.b16 %v970, %v970
    %v987 = vpack.c.b16 %v971, %v971
    %v988 = vpack.c.b16 %v972, %v972
    %v989 = vpack.c.b16 %v973, %v973
    %v990 = vpack.c.b16 %v974, %v974
    %v991 = vpack.c.b16 %v975, %v975
    %v992 = vpack.c.b16 %v976, %v976
    %v993 = vpack.c.b16 %v977, %v977
    %v994 = vpack.c.b16 %v978, %v978
    %v995 = vpack.c.b16 %v979, %v979
    %v996 = vpack.c.b16 %v980, %v980
    %v997 = vpack.c.b16 %v981, %v981
    %v998 = vpack.c.b16 %v982, %v982
    %v999 = vpack.c.b16 %v983, %v983
    %v1000 = vpack.c.b16 %v984, %v984
    %1017 = vst.msk [vmem:[#allocation3 + $0x4] sm:$0xf] %vm533, %v985
    %1018 = vst.msk [vmem:[#allocation3 + $0x10] sm:$0xf] %vm533, %v986
    %1019 = vst.msk [vmem:[#allocation3 + $0x1c] sm:$0xf] %vm533, %v987
    %1020 = vst.msk [vmem:[#allocation3 + $0x28] sm:$0xf] %vm533, %v988
    %1021 = vst.msk [vmem:[#allocation3 + $0x34] sm:$0xf] %vm533, %v989
    %1022 = vst.msk [vmem:[#allocation3 + $0x40] sm:$0xf] %vm533, %v990
    %1023 = vst.msk [vmem:[#allocation3 + $0x4c] sm:$0xf] %vm533, %v991
    %1024 = vst.msk [vmem:[#allocation3 + $0x58] sm:$0xf] %vm533, %v992
    %1025 = vst.msk [vmem:[#allocation3 + $0x64] sm:$0xf] %vm533, %v993
    %1026 = vst.msk [vmem:[#allocation3 + $0x70] sm:$0xf] %vm533, %v994
    %1027 = vst.msk [vmem:[#allocation3 + $0x7c] sm:$0xf] %vm533, %v995
    %1028 = vst.msk [vmem:[#allocation3 + $0x88] sm:$0xf] %vm533, %v996
    %1029 = vst.msk [vmem:[#allocation3 + $0x94] sm:$0xf] %vm533, %v997
    %1030 = vst.msk [vmem:[#allocation3 + $0xa0] sm:$0xf] %vm533, %v998
    %1031 = vst.msk [vmem:[#allocation3 + $0xac] sm:$0xf] %vm533, %v999
    %1032 = vst.msk [vmem:[#allocation3 + $0xb8] sm:$0xf] %vm533, %v1000
    %v1033 = vld [vmem:[%s436 + $0x2] sm:$0xff]
    %v1034 = vld [vmem:[%s436 + $0x12] sm:$0xff]
    %v1035 = vld [vmem:[%s436 + $0x22] sm:$0xff]
    %v1036 = vld [vmem:[%s436 + $0x32] sm:$0xff]
    %v1037 = vld [vmem:[%s436 + $0x42] sm:$0xff]
    %v1038 = vld [vmem:[%s436 + $0x52] sm:$0xff]
    %v1039 = vld [vmem:[%s436 + $0x62] sm:$0xff]
    %v1040 = vld [vmem:[%s436 + $0x72] sm:$0xff]
    %v1041 = vld [vmem:[%s436 + $0xa2] sm:$0xff]
    %v1042 = vld [vmem:[%s436 + $0xb2] sm:$0xff]
    %v1043 = vld [vmem:[%s436 + $0xc2] sm:$0xff]
    %v1044 = vld [vmem:[%s436 + $0xd2] sm:$0xff]
    %v1045 = vld [vmem:[%s436 + $0xe2] sm:$0xff]
    %v1046 = vld [vmem:[%s436 + $0xf2] sm:$0xff]
    %v1047 = vld [vmem:[%s436 + $0x102] sm:$0xff]
    %v1048 = vld [vmem:[%s436 + $0x112] sm:$0xff]
    %v1049 = vpack.c.bf16 %v1034, %v1033
    %v1050 = vpack.c.bf16 %v1036, %v1035
    %v1051 = vpack.c.bf16 %v1038, %v1037
    %v1052 = vpack.c.bf16 %v1040, %v1039
    %v1053 = vpack.c.bf16 %v1042, %v1041
    %v1054 = vpack.c.bf16 %v1044, %v1043
    %v1055 = vpack.c.bf16 %v1046, %v1045
    %v1056 = vpack.c.bf16 %v1048, %v1047
    %v1065 = vunpack.c.l.b16 %v1049
    %v1066 = vunpack.c.h.b16 %v1049
    %v1067 = vunpack.c.l.b16 %v1050
    %v1068 = vunpack.c.h.b16 %v1050
    %v1069 = vunpack.c.l.b16 %v1051
    %v1070 = vunpack.c.h.b16 %v1051
    %v1071 = vunpack.c.l.b16 %v1052
    %v1072 = vunpack.c.h.b16 %v1052
    %v1073 = vunpack.c.l.b16 %v1053
    %v1074 = vunpack.c.h.b16 %v1053
    %v1075 = vunpack.c.l.b16 %v1054
    %v1076 = vunpack.c.h.b16 %v1054
    %v1077 = vunpack.c.l.b16 %v1055
    %v1078 = vunpack.c.h.b16 %v1055
    %v1079 = vunpack.c.l.b16 %v1056
    %v1080 = vunpack.c.h.b16 %v1056
    %v1081 = vpack.c.b16 %v1065, %v1065
    %v1082 = vpack.c.b16 %v1066, %v1066
    %v1083 = vpack.c.b16 %v1067, %v1067
    %v1084 = vpack.c.b16 %v1068, %v1068
    %v1085 = vpack.c.b16 %v1069, %v1069
    %v1086 = vpack.c.b16 %v1070, %v1070
    %v1087 = vpack.c.b16 %v1071, %v1071
    %v1088 = vpack.c.b16 %v1072, %v1072
    %v1089 = vpack.c.b16 %v1073, %v1073
    %v1090 = vpack.c.b16 %v1074, %v1074
    %v1091 = vpack.c.b16 %v1075, %v1075
    %v1092 = vpack.c.b16 %v1076, %v1076
    %v1093 = vpack.c.b16 %v1077, %v1077
    %v1094 = vpack.c.b16 %v1078, %v1078
    %v1095 = vpack.c.b16 %v1079, %v1079
    %v1096 = vpack.c.b16 %v1080, %v1080
    %1097 = vrot.lane.b32.xlu0 %v1081, 32
    %v1098 = vpop.permute.xlu0 %1097
    %1099 = vrot.lane.b32.xlu0 %v1082, 32
    %v1100 = vpop.permute.xlu0 %1099
    %1101 = vrot.lane.b32.xlu0 %v1083, 32
    %v1102 = vpop.permute.xlu0 %1101
    %1103 = vrot.lane.b32.xlu0 %v1084, 32
    %v1104 = vpop.permute.xlu0 %1103
    %1105 = vrot.lane.b32.xlu0 %v1085, 32
    %v1106 = vpop.permute.xlu0 %1105
    %1107 = vrot.lane.b32.xlu0 %v1086, 32
    %v1108 = vpop.permute.xlu0 %1107
    %1109 = vrot.lane.b32.xlu0 %v1087, 32
    %v1110 = vpop.permute.xlu0 %1109
    %1111 = vrot.lane.b32.xlu0 %v1088, 32
    %v1112 = vpop.permute.xlu0 %1111
    %1113 = vrot.lane.b32.xlu0 %v1089, 32
    %v1114 = vpop.permute.xlu0 %1113
    %1115 = vrot.lane.b32.xlu0 %v1090, 32
    %v1116 = vpop.permute.xlu0 %1115
    %1117 = vrot.lane.b32.xlu0 %v1091, 32
    %v1118 = vpop.permute.xlu0 %1117
    %1119 = vrot.lane.b32.xlu0 %v1092, 32
    %v1120 = vpop.permute.xlu0 %1119
    %1121 = vrot.lane.b32.xlu0 %v1093, 32
    %v1122 = vpop.permute.xlu0 %1121
    %1123 = vrot.lane.b32.xlu0 %v1094, 32
    %v1124 = vpop.permute.xlu0 %1123
    %1125 = vrot.lane.b32.xlu0 %v1095, 32
    %v1126 = vpop.permute.xlu0 %1125
    %1127 = vrot.lane.b32.xlu0 %v1096, 32
    %v1128 = vpop.permute.xlu0 %1127
    %1145 = vst.msk [vmem:[#allocation3 + $0x4] sm:$0xf] %vm662, %v1098
    %1146 = vst.msk [vmem:[#allocation3 + $0x10] sm:$0xf] %vm662, %v1100
    %1147 = vst.msk [vmem:[#allocation3 + $0x1c] sm:$0xf] %vm662, %v1102
    %1148 = vst.msk [vmem:[#allocation3 + $0x28] sm:$0xf] %vm662, %v1104
    %1149 = vst.msk [vmem:[#allocation3 + $0x34] sm:$0xf] %vm662, %v1106
    %1150 = vst.msk [vmem:[#allocation3 + $0x40] sm:$0xf] %vm662, %v1108
    %1151 = vst.msk [vmem:[#allocation3 + $0x4c] sm:$0xf] %vm662, %v1110
    %1152 = vst.msk [vmem:[#allocation3 + $0x58] sm:$0xf] %vm662, %v1112
    %1153 = vst.msk [vmem:[#allocation3 + $0x64] sm:$0xf] %vm662, %v1114
    %1154 = vst.msk [vmem:[#allocation3 + $0x70] sm:$0xf] %vm662, %v1116
    %1155 = vst.msk [vmem:[#allocation3 + $0x7c] sm:$0xf] %vm662, %v1118
    %1156 = vst.msk [vmem:[#allocation3 + $0x88] sm:$0xf] %vm662, %v1120
    %1157 = vst.msk [vmem:[#allocation3 + $0x94] sm:$0xf] %vm662, %v1122
    %1158 = vst.msk [vmem:[#allocation3 + $0xa0] sm:$0xf] %vm662, %v1124
    %1159 = vst.msk [vmem:[#allocation3 + $0xac] sm:$0xf] %vm662, %v1126
    %1160 = vst.msk [vmem:[#allocation3 + $0xb8] sm:$0xf] %vm662, %v1128
    %s1161 = scalar_lea.vmem [#allocation2], 32
    %v1162 = vld [vmem:[%s1161] sm:$0xff]
    %v1163 = vld [vmem:[%s1161 + $0x10] sm:$0xff]
    %v1164 = vld [vmem:[%s1161 + $0x20] sm:$0xff]
    %v1165 = vld [vmem:[%s1161 + $0x30] sm:$0xff]
    %v1166 = vld [vmem:[%s1161 + $0x40] sm:$0xff]
    %v1167 = vld [vmem:[%s1161 + $0x50] sm:$0xff]
    %v1168 = vld [vmem:[%s1161 + $0x60] sm:$0xff]
    %v1169 = vld [vmem:[%s1161 + $0x70] sm:$0xff]
    %v1170 = vld [vmem:[%s1161 + $0xa0] sm:$0xff]
    %v1171 = vld [vmem:[%s1161 + $0xb0] sm:$0xff]
    %v1172 = vld [vmem:[%s1161 + $0xc0] sm:$0xff]
    %v1173 = vld [vmem:[%s1161 + $0xd0] sm:$0xff]
    %v1174 = vld [vmem:[%s1161 + $0xe0] sm:$0xff]
    %v1175 = vld [vmem:[%s1161 + $0xf0] sm:$0xff]
    %v1176 = vld [vmem:[%s1161 + $0x100] sm:$0xff]
    %v1177 = vld [vmem:[%s1161 + $0x110] sm:$0xff]
    %v1178 = vpack.c.bf16 %v1163, %v1162
    %v1179 = vpack.c.bf16 %v1165, %v1164
    %v1180 = vpack.c.bf16 %v1167, %v1166
    %v1181 = vpack.c.bf16 %v1169, %v1168
    %v1182 = vpack.c.bf16 %v1171, %v1170
    %v1183 = vpack.c.bf16 %v1173, %v1172
    %v1184 = vpack.c.bf16 %v1175, %v1174
    %v1185 = vpack.c.bf16 %v1177, %v1176
    %v1194 = vunpack.c.l.b16 %v1178
    %v1195 = vunpack.c.h.b16 %v1178
    %v1196 = vunpack.c.l.b16 %v1179
    %v1197 = vunpack.c.h.b16 %v1179
    %v1198 = vunpack.c.l.b16 %v1180
    %v1199 = vunpack.c.h.b16 %v1180
    %v1200 = vunpack.c.l.b16 %v1181
    %v1201 = vunpack.c.h.b16 %v1181
    %v1202 = vunpack.c.l.b16 %v1182
    %v1203 = vunpack.c.h.b16 %v1182
    %v1204 = vunpack.c.l.b16 %v1183
    %v1205 = vunpack.c.h.b16 %v1183
    %v1206 = vunpack.c.l.b16 %v1184
    %v1207 = vunpack.c.h.b16 %v1184
    %v1208 = vunpack.c.l.b16 %v1185
    %v1209 = vunpack.c.h.b16 %v1185
    %v1210 = vpack.c.b16 %v1194, %v1194
    %v1211 = vpack.c.b16 %v1195, %v1195
    %v1212 = vpack.c.b16 %v1196, %v1196
    %v1213 = vpack.c.b16 %v1197, %v1197
    %v1214 = vpack.c.b16 %v1198, %v1198
    %v1215 = vpack.c.b16 %v1199, %v1199
    %v1216 = vpack.c.b16 %v1200, %v1200
    %v1217 = vpack.c.b16 %v1201, %v1201
    %v1218 = vpack.c.b16 %v1202, %v1202
    %v1219 = vpack.c.b16 %v1203, %v1203
    %v1220 = vpack.c.b16 %v1204, %v1204
    %v1221 = vpack.c.b16 %v1205, %v1205
    %v1222 = vpack.c.b16 %v1206, %v1206
    %v1223 = vpack.c.b16 %v1207, %v1207
    %v1224 = vpack.c.b16 %v1208, %v1208
    %v1225 = vpack.c.b16 %v1209, %v1209
    %1226 = vrot.lane.b32.xlu0 %v1210, 64
    %v1227 = vpop.permute.xlu0 %1226
    %1228 = vrot.lane.b32.xlu0 %v1211, 64
    %v1229 = vpop.permute.xlu0 %1228
    %1230 = vrot.lane.b32.xlu0 %v1212, 64
    %v1231 = vpop.permute.xlu0 %1230
    %1232 = vrot.lane.b32.xlu0 %v1213, 64
    %v1233 = vpop.permute.xlu0 %1232
    %1234 = vrot.lane.b32.xlu0 %v1214, 64
    %v1235 = vpop.permute.xlu0 %1234
    %1236 = vrot.lane.b32.xlu0 %v1215, 64
    %v1237 = vpop.permute.xlu0 %1236
    %1238 = vrot.lane.b32.xlu0 %v1216, 64
    %v1239 = vpop.permute.xlu0 %1238
    %1240 = vrot.lane.b32.xlu0 %v1217, 64
    %v1241 = vpop.permute.xlu0 %1240
    %1242 = vrot.lane.b32.xlu0 %v1218, 64
    %v1243 = vpop.permute.xlu0 %1242
    %1244 = vrot.lane.b32.xlu0 %v1219, 64
    %v1245 = vpop.permute.xlu0 %1244
    %1246 = vrot.lane.b32.xlu0 %v1220, 64
    %v1247 = vpop.permute.xlu0 %1246
    %1248 = vrot.lane.b32.xlu0 %v1221, 64
    %v1249 = vpop.permute.xlu0 %1248
    %1250 = vrot.lane.b32.xlu0 %v1222, 64
    %v1251 = vpop.permute.xlu0 %1250
    %1252 = vrot.lane.b32.xlu0 %v1223, 64
    %v1253 = vpop.permute.xlu0 %1252
    %1254 = vrot.lane.b32.xlu0 %v1224, 64
    %v1255 = vpop.permute.xlu0 %1254
    %1256 = vrot.lane.b32.xlu0 %v1225, 64
    %v1257 = vpop.permute.xlu0 %1256
    %1274 = vst.msk [vmem:[#allocation3 + $0x4] sm:$0xf] %vm791, %v1227
    %1275 = vst.msk [vmem:[#allocation3 + $0x10] sm:$0xf] %vm791, %v1229
    %1276 = vst.msk [vmem:[#allocation3 + $0x1c] sm:$0xf] %vm791, %v1231
    %1277 = vst.msk [vmem:[#allocation3 + $0x28] sm:$0xf] %vm791, %v1233
    %1278 = vst.msk [vmem:[#allocation3 + $0x34] sm:$0xf] %vm791, %v1235
    %1279 = vst.msk [vmem:[#allocation3 + $0x40] sm:$0xf] %vm791, %v1237
    %1280 = vst.msk [vmem:[#allocation3 + $0x4c] sm:$0xf] %vm791, %v1239
    %1281 = vst.msk [vmem:[#allocation3 + $0x58] sm:$0xf] %vm791, %v1241
    %1282 = vst.msk [vmem:[#allocation3 + $0x64] sm:$0xf] %vm791, %v1243
    %1283 = vst.msk [vmem:[#allocation3 + $0x70] sm:$0xf] %vm791, %v1245
    %1284 = vst.msk [vmem:[#allocation3 + $0x7c] sm:$0xf] %vm791, %v1247
    %1285 = vst.msk [vmem:[#allocation3 + $0x88] sm:$0xf] %vm791, %v1249
    %1286 = vst.msk [vmem:[#allocation3 + $0x94] sm:$0xf] %vm791, %v1251
    %1287 = vst.msk [vmem:[#allocation3 + $0xa0] sm:$0xf] %vm791, %v1253
    %1288 = vst.msk [vmem:[#allocation3 + $0xac] sm:$0xf] %vm791, %v1255
    %1289 = vst.msk [vmem:[#allocation3 + $0xb8] sm:$0xf] %vm791, %v1257
    %v1290 = vld [vmem:[%s1161 + $0x1] sm:$0xff]
    %v1291 = vld [vmem:[%s1161 + $0x11] sm:$0xff]
    %v1292 = vld [vmem:[%s1161 + $0x21] sm:$0xff]
    %v1293 = vld [vmem:[%s1161 + $0x31] sm:$0xff]
    %v1294 = vld [vmem:[%s1161 + $0x41] sm:$0xff]
    %v1295 = vld [vmem:[%s1161 + $0x51] sm:$0xff]
    %v1296 = vld [vmem:[%s1161 + $0x61] sm:$0xff]
    %v1297 = vld [vmem:[%s1161 + $0x71] sm:$0xff]
    %v1298 = vld [vmem:[%s1161 + $0xa1] sm:$0xff]
    %v1299 = vld [vmem:[%s1161 + $0xb1] sm:$0xff]
    %v1300 = vld [vmem:[%s1161 + $0xc1] sm:$0xff]
    %v1301 = vld [vmem:[%s1161 + $0xd1] sm:$0xff]
    %v1302 = vld [vmem:[%s1161 + $0xe1] sm:$0xff]
    %v1303 = vld [vmem:[%s1161 + $0xf1] sm:$0xff]
    %v1304 = vld [vmem:[%s1161 + $0x101] sm:$0xff]
    %v1305 = vld [vmem:[%s1161 + $0x111] sm:$0xff]
    %v1306 = vpack.c.bf16 %v1291, %v1290
    %v1307 = vpack.c.bf16 %v1293, %v1292
    %v1308 = vpack.c.bf16 %v1295, %v1294
    %v1309 = vpack.c.bf16 %v1297, %v1296
    %v1310 = vpack.c.bf16 %v1299, %v1298
    %v1311 = vpack.c.bf16 %v1301, %v1300
    %v1312 = vpack.c.bf16 %v1303, %v1302
    %v1313 = vpack.c.bf16 %v1305, %v1304
    %v1322 = vunpack.c.l.b16 %v1306
    %v1323 = vunpack.c.h.b16 %v1306
    %v1324 = vunpack.c.l.b16 %v1307
    %v1325 = vunpack.c.h.b16 %v1307
    %v1326 = vunpack.c.l.b16 %v1308
    %v1327 = vunpack.c.h.b16 %v1308
    %v1328 = vunpack.c.l.b16 %v1309
    %v1329 = vunpack.c.h.b16 %v1309
    %v1330 = vunpack.c.l.b16 %v1310
    %v1331 = vunpack.c.h.b16 %v1310
    %v1332 = vunpack.c.l.b16 %v1311
    %v1333 = vunpack.c.h.b16 %v1311
    %v1334 = vunpack.c.l.b16 %v1312
    %v1335 = vunpack.c.h.b16 %v1312
    %v1336 = vunpack.c.l.b16 %v1313
    %v1337 = vunpack.c.h.b16 %v1313
    %v1338 = vpack.c.b16 %v1322, %v1322
    %v1339 = vpack.c.b16 %v1323, %v1323
    %v1340 = vpack.c.b16 %v1324, %v1324
    %v1341 = vpack.c.b16 %v1325, %v1325
    %v1342 = vpack.c.b16 %v1326, %v1326
    %v1343 = vpack.c.b16 %v1327, %v1327
    %v1344 = vpack.c.b16 %v1328, %v1328
    %v1345 = vpack.c.b16 %v1329, %v1329
    %v1346 = vpack.c.b16 %v1330, %v1330
    %v1347 = vpack.c.b16 %v1331, %v1331
    %v1348 = vpack.c.b16 %v1332, %v1332
    %v1349 = vpack.c.b16 %v1333, %v1333
    %v1350 = vpack.c.b16 %v1334, %v1334
    %v1351 = vpack.c.b16 %v1335, %v1335
    %v1352 = vpack.c.b16 %v1336, %v1336
    %v1353 = vpack.c.b16 %v1337, %v1337
    %1354 = vrot.lane.b32.xlu0 %v1338, 96
    %v1355 = vpop.permute.xlu0 %1354
    %1356 = vrot.lane.b32.xlu0 %v1339, 96
    %v1357 = vpop.permute.xlu0 %1356
    %1358 = vrot.lane.b32.xlu0 %v1340, 96
    %v1359 = vpop.permute.xlu0 %1358
    %1360 = vrot.lane.b32.xlu0 %v1341, 96
    %v1361 = vpop.permute.xlu0 %1360
    %1362 = vrot.lane.b32.xlu0 %v1342, 96
    %v1363 = vpop.permute.xlu0 %1362
    %1364 = vrot.lane.b32.xlu0 %v1343, 96
    %v1365 = vpop.permute.xlu0 %1364
    %1366 = vrot.lane.b32.xlu0 %v1344, 96
    %v1367 = vpop.permute.xlu0 %1366
    %1368 = vrot.lane.b32.xlu0 %v1345, 96
    %v1369 = vpop.permute.xlu0 %1368
    %1370 = vrot.lane.b32.xlu0 %v1346, 96
    %v1371 = vpop.permute.xlu0 %1370
    %1372 = vrot.lane.b32.xlu0 %v1347, 96
    %v1373 = vpop.permute.xlu0 %1372
    %1374 = vrot.lane.b32.xlu0 %v1348, 96
    %v1375 = vpop.permute.xlu0 %1374
    %1376 = vrot.lane.b32.xlu0 %v1349, 96
    %v1377 = vpop.permute.xlu0 %1376
    %1378 = vrot.lane.b32.xlu0 %v1350, 96
    %v1379 = vpop.permute.xlu0 %1378
    %1380 = vrot.lane.b32.xlu0 %v1351, 96
    %v1381 = vpop.permute.xlu0 %1380
    %1382 = vrot.lane.b32.xlu0 %v1352, 96
    %v1383 = vpop.permute.xlu0 %1382
    %1384 = vrot.lane.b32.xlu0 %v1353, 96
    %v1385 = vpop.permute.xlu0 %1384
    %1402 = vst.msk [vmem:[#allocation3 + $0x4] sm:$0xf] %vm920, %v1355
    %1403 = vst.msk [vmem:[#allocation3 + $0x10] sm:$0xf] %vm920, %v1357
    %1404 = vst.msk [vmem:[#allocation3 + $0x1c] sm:$0xf] %vm920, %v1359
    %1405 = vst.msk [vmem:[#allocation3 + $0x28] sm:$0xf] %vm920, %v1361
    %1406 = vst.msk [vmem:[#allocation3 + $0x34] sm:$0xf] %vm920, %v1363
    %1407 = vst.msk [vmem:[#allocation3 + $0x40] sm:$0xf] %vm920, %v1365
    %1408 = vst.msk [vmem:[#allocation3 + $0x4c] sm:$0xf] %vm920, %v1367
    %1409 = vst.msk [vmem:[#allocation3 + $0x58] sm:$0xf] %vm920, %v1369
    %1410 = vst.msk [vmem:[#allocation3 + $0x64] sm:$0xf] %vm920, %v1371
    %1411 = vst.msk [vmem:[#allocation3 + $0x70] sm:$0xf] %vm920, %v1373
    %1412 = vst.msk [vmem:[#allocation3 + $0x7c] sm:$0xf] %vm920, %v1375
    %1413 = vst.msk [vmem:[#allocation3 + $0x88] sm:$0xf] %vm920, %v1377
    %1414 = vst.msk [vmem:[#allocation3 + $0x94] sm:$0xf] %vm920, %v1379
    %1415 = vst.msk [vmem:[#allocation3 + $0xa0] sm:$0xf] %vm920, %v1381
    %1416 = vst.msk [vmem:[#allocation3 + $0xac] sm:$0xf] %vm920, %v1383
    %1417 = vst.msk [vmem:[#allocation3 + $0xb8] sm:$0xf] %vm920, %v1385
    %v1418 = vld [vmem:[%s1161 + $0x2] sm:$0xff]
    %v1419 = vld [vmem:[%s1161 + $0x12] sm:$0xff]
    %v1420 = vld [vmem:[%s1161 + $0x22] sm:$0xff]
    %v1421 = vld [vmem:[%s1161 + $0x32] sm:$0xff]
    %v1422 = vld [vmem:[%s1161 + $0x42] sm:$0xff]
    %v1423 = vld [vmem:[%s1161 + $0x52] sm:$0xff]
    %v1424 = vld [vmem:[%s1161 + $0x62] sm:$0xff]
    %v1425 = vld [vmem:[%s1161 + $0x72] sm:$0xff]
    %v1426 = vld [vmem:[%s1161 + $0xa2] sm:$0xff]
    %v1427 = vld [vmem:[%s1161 + $0xb2] sm:$0xff]
    %v1428 = vld [vmem:[%s1161 + $0xc2] sm:$0xff]
    %v1429 = vld [vmem:[%s1161 + $0xd2] sm:$0xff]
    %v1430 = vld [vmem:[%s1161 + $0xe2] sm:$0xff]
    %v1431 = vld [vmem:[%s1161 + $0xf2] sm:$0xff]
    %v1432 = vld [vmem:[%s1161 + $0x102] sm:$0xff]
    %v1433 = vld [vmem:[%s1161 + $0x112] sm:$0xff]
    %v1434 = vpack.c.bf16 %v1419, %v1418
    %v1435 = vpack.c.bf16 %v1421, %v1420
    %v1436 = vpack.c.bf16 %v1423, %v1422
    %v1437 = vpack.c.bf16 %v1425, %v1424
    %v1438 = vpack.c.bf16 %v1427, %v1426
    %v1439 = vpack.c.bf16 %v1429, %v1428
    %v1440 = vpack.c.bf16 %v1431, %v1430
    %v1441 = vpack.c.bf16 %v1433, %v1432
    %v1450 = vunpack.c.l.b16 %v1434
    %v1451 = vunpack.c.h.b16 %v1434
    %v1452 = vunpack.c.l.b16 %v1435
    %v1453 = vunpack.c.h.b16 %v1435
    %v1454 = vunpack.c.l.b16 %v1436
    %v1455 = vunpack.c.h.b16 %v1436
    %v1456 = vunpack.c.l.b16 %v1437
    %v1457 = vunpack.c.h.b16 %v1437
    %v1458 = vunpack.c.l.b16 %v1438
    %v1459 = vunpack.c.h.b16 %v1438
    %v1460 = vunpack.c.l.b16 %v1439
    %v1461 = vunpack.c.h.b16 %v1439
    %v1462 = vunpack.c.l.b16 %v1440
    %v1463 = vunpack.c.h.b16 %v1440
    %v1464 = vunpack.c.l.b16 %v1441
    %v1465 = vunpack.c.h.b16 %v1441
    %v1466 = vpack.c.b16 %v1450, %v1450
    %v1467 = vpack.c.b16 %v1451, %v1451
    %v1468 = vpack.c.b16 %v1452, %v1452
    %v1469 = vpack.c.b16 %v1453, %v1453
    %v1470 = vpack.c.b16 %v1454, %v1454
    %v1471 = vpack.c.b16 %v1455, %v1455
    %v1472 = vpack.c.b16 %v1456, %v1456
    %v1473 = vpack.c.b16 %v1457, %v1457
    %v1474 = vpack.c.b16 %v1458, %v1458
    %v1475 = vpack.c.b16 %v1459, %v1459
    %v1476 = vpack.c.b16 %v1460, %v1460
    %v1477 = vpack.c.b16 %v1461, %v1461
    %v1478 = vpack.c.b16 %v1462, %v1462
    %v1479 = vpack.c.b16 %v1463, %v1463
    %v1480 = vpack.c.b16 %v1464, %v1464
    %v1481 = vpack.c.b16 %v1465, %v1465
    %1498 = vst.msk [vmem:[#allocation3 + $0x8] sm:$0xf] %vm533, %v1466
    %1499 = vst.msk [vmem:[#allocation3 + $0x14] sm:$0xf] %vm533, %v1467
    %1500 = vst.msk [vmem:[#allocation3 + $0x20] sm:$0xf] %vm533, %v1468
    %1501 = vst.msk [vmem:[#allocation3 + $0x2c] sm:$0xf] %vm533, %v1469
    %1502 = vst.msk [vmem:[#allocation3 + $0x38] sm:$0xf] %vm533, %v1470
    %1503 = vst.msk [vmem:[#allocation3 + $0x44] sm:$0xf] %vm533, %v1471
    %1504 = vst.msk [vmem:[#allocation3 + $0x50] sm:$0xf] %vm533, %v1472
    %1505 = vst.msk [vmem:[#allocation3 + $0x5c] sm:$0xf] %vm533, %v1473
    %1506 = vst.msk [vmem:[#allocation3 + $0x68] sm:$0xf] %vm533, %v1474
    %1507 = vst.msk [vmem:[#allocation3 + $0x74] sm:$0xf] %vm533, %v1475
    %1508 = vst.msk [vmem:[#allocation3 + $0x80] sm:$0xf] %vm533, %v1476
    %1509 = vst.msk [vmem:[#allocation3 + $0x8c] sm:$0xf] %vm533, %v1477
    %1510 = vst.msk [vmem:[#allocation3 + $0x98] sm:$0xf] %vm533, %v1478
    %1511 = vst.msk [vmem:[#allocation3 + $0xa4] sm:$0xf] %vm533, %v1479
    %1512 = vst.msk [vmem:[#allocation3 + $0xb0] sm:$0xf] %vm533, %v1480
    %1513 = vst.msk [vmem:[#allocation3 + $0xbc] sm:$0xf] %vm533, %v1481
    %v1514 = vld [vmem:[#allocation3] sm:$0xff]
    %v1515 = vld [vmem:[#allocation3 + $0x8] sm:$0xf]
    %v1516 = vld [vmem:[#allocation3 + $0xc] sm:$0xff]
    %v1517 = vld [vmem:[#allocation3 + $0x14] sm:$0xf]
    %v1518 = vld [vmem:[#allocation3 + $0x18] sm:$0xff]
    %v1519 = vld [vmem:[#allocation3 + $0x20] sm:$0xf]
    %v1520 = vld [vmem:[#allocation3 + $0x24] sm:$0xff]
    %v1521 = vld [vmem:[#allocation3 + $0x2c] sm:$0xf]
    %v1522 = vld [vmem:[#allocation3 + $0x30] sm:$0xff]
    %v1523 = vld [vmem:[#allocation3 + $0x38] sm:$0xf]
    %v1524 = vld [vmem:[#allocation3 + $0x3c] sm:$0xff]
    %v1525 = vld [vmem:[#allocation3 + $0x44] sm:$0xf]
    %v1526 = vld [vmem:[#allocation3 + $0x48] sm:$0xff]
    %v1527 = vld [vmem:[#allocation3 + $0x50] sm:$0xf]
    %v1528 = vld [vmem:[#allocation3 + $0x54] sm:$0xff]
    %v1529 = vld [vmem:[#allocation3 + $0x5c] sm:$0xf]
    %v1530 = vld [vmem:[#allocation3 + $0x60] sm:$0xff]
    %v1531 = vld [vmem:[#allocation3 + $0x68] sm:$0xf]
    %v1532 = vld [vmem:[#allocation3 + $0x6c] sm:$0xff]
    %v1533 = vld [vmem:[#allocation3 + $0x74] sm:$0xf]
    %v1534 = vld [vmem:[#allocation3 + $0x78] sm:$0xff]
    %v1535 = vld [vmem:[#allocation3 + $0x80] sm:$0xf]
    %v1536 = vld [vmem:[#allocation3 + $0x84] sm:$0xff]
    %v1537 = vld [vmem:[#allocation3 + $0x8c] sm:$0xf]
    %v1538 = vld [vmem:[#allocation3 + $0x90] sm:$0xff]
    %v1539 = vld [vmem:[#allocation3 + $0x98] sm:$0xf]
    %v1540 = vld [vmem:[#allocation3 + $0x9c] sm:$0xff]
    %v1541 = vld [vmem:[#allocation3 + $0xa4] sm:$0xf]
    %v1542 = vld [vmem:[#allocation3 + $0xa8] sm:$0xff]
    %v1543 = vld [vmem:[#allocation3 + $0xb0] sm:$0xf]
    %v1544 = vld [vmem:[#allocation3 + $0xb4] sm:$0xff]
    %v1545 = vld [vmem:[#allocation3 + $0xbc] sm:$0xf]
    %v1546 = vld [vmem:[%s4] sm:$0xf]
    %v1547 = vld [vmem:[%s4 + $0x4] sm:$0xf]
    %v1548 = vld [vmem:[%s4 + $0x8] sm:$0xf]
    %v1549 = vld [vmem:[%s4 + $0xc] sm:$0xf]
    %v1550 = vld [vmem:[%s4 + $0x10] sm:$0xf]
    %v1551 = vld [vmem:[%s4 + $0x14] sm:$0xf]
    %v1552 = vld [vmem:[%s4 + $0x18] sm:$0xf]
    %v1553 = vld [vmem:[%s4 + $0x1c] sm:$0xf]
    %v1554 = vld [vmem:[%s4 + $0x20] sm:$0xf]
    %v1555 = vld [vmem:[%s4 + $0x24] sm:$0xf]
    %v1556 = vld [vmem:[%s4 + $0x28] sm:$0xf]
    %v1557 = vld [vmem:[%s4 + $0x2c] sm:$0xf]
    %v1558 = vld [vmem:[%s4 + $0x30] sm:$0xf]
    %v1559 = vld [vmem:[%s4 + $0x34] sm:$0xf]
    %v1560 = vld [vmem:[%s4 + $0x38] sm:$0xf]
    %v1561 = vld [vmem:[%s4 + $0x3c] sm:$0xf]
    %v1562 = vld [vmem:[%s4 + $0x40] sm:$0xf]
    %v1563 = vld [vmem:[%s4 + $0x44] sm:$0xf]
    %v1564 = vld [vmem:[%s4 + $0x48] sm:$0xf]
    %v1565 = vld [vmem:[%s4 + $0x4c] sm:$0xf]
    %v1566 = vld [vmem:[%s4 + $0x50] sm:$0xf]
    %v1567 = vld [vmem:[%s4 + $0x54] sm:$0xf]
    %v1568 = vld [vmem:[%s4 + $0x58] sm:$0xf]
    %v1569 = vld [vmem:[%s4 + $0x5c] sm:$0xf]
    %v1570 = vld [vmem:[%s4 + $0x60] sm:$0xf]
    %v1571 = vld [vmem:[%s4 + $0x64] sm:$0xf]
    %v1572 = vld [vmem:[%s4 + $0x68] sm:$0xf]
    %v1573 = vld [vmem:[%s4 + $0x6c] sm:$0xf]
    %v1574 = vld [vmem:[%s4 + $0x70] sm:$0xf]
    %v1575 = vld [vmem:[%s4 + $0x74] sm:$0xf]
    %v1576 = vld [vmem:[%s4 + $0x78] sm:$0xf]
    %v1577 = vld [vmem:[%s4 + $0x7c] sm:$0xf]
    %v1578 = vld [vmem:[%s4 + $0x80] sm:$0xf]
    %v1579 = vld [vmem:[%s4 + $0x84] sm:$0xf]
    %v1580 = vld [vmem:[%s4 + $0x88] sm:$0xf]
    %v1581 = vld [vmem:[%s4 + $0x8c] sm:$0xf]
    %v1614 = vunpack.c.l.b16 %v1514
    %v1615 = vunpack.c.h.b16 %v1514
    %v1616 = vunpack.c.l.b16 %v1515
    %v1617 = vunpack.c.l.b16 %v1516
    %v1618 = vunpack.c.h.b16 %v1516
    %v1619 = vunpack.c.l.b16 %v1517
    %v1620 = vunpack.c.l.b16 %v1518
    %v1621 = vunpack.c.h.b16 %v1518
    %v1622 = vunpack.c.l.b16 %v1519
    %v1623 = vunpack.c.l.b16 %v1520
    %v1624 = vunpack.c.h.b16 %v1520
    %v1625 = vunpack.c.l.b16 %v1521
    %v1626 = vunpack.c.l.b16 %v1522
    %v1627 = vunpack.c.h.b16 %v1522
    %v1628 = vunpack.c.l.b16 %v1523
    %v1629 = vunpack.c.l.b16 %v1524
    %v1630 = vunpack.c.h.b16 %v1524
    %v1631 = vunpack.c.l.b16 %v1525
    %v1632 = vunpack.c.l.b16 %v1526
    %v1633 = vunpack.c.h.b16 %v1526
    %v1634 = vunpack.c.l.b16 %v1527
    %v1635 = vunpack.c.l.b16 %v1528
    %v1636 = vunpack.c.h.b16 %v1528
    %v1637 = vunpack.c.l.b16 %v1529
    %v1638 = vunpack.c.l.b16 %v1530
    %v1639 = vunpack.c.h.b16 %v1530
    %v1640 = vunpack.c.l.b16 %v1531
    %v1641 = vunpack.c.l.b16 %v1532
    %v1642 = vunpack.c.h.b16 %v1532
    %v1643 = vunpack.c.l.b16 %v1533
    %v1644 = vunpack.c.l.b16 %v1534
    %v1645 = vunpack.c.h.b16 %v1534
    %v1646 = vunpack.c.l.b16 %v1535
    %v1647 = vunpack.c.l.b16 %v1536
    %v1648 = vunpack.c.h.b16 %v1536
    %v1649 = vunpack.c.l.b16 %v1537
    %v1650 = vunpack.c.l.b16 %v1538
    %v1651 = vunpack.c.h.b16 %v1538
    %v1652 = vunpack.c.l.b16 %v1539
    %v1653 = vunpack.c.l.b16 %v1540
    %v1654 = vunpack.c.h.b16 %v1540
    %v1655 = vunpack.c.l.b16 %v1541
    %v1656 = vunpack.c.l.b16 %v1542
    %v1657 = vunpack.c.h.b16 %v1542
    %v1658 = vunpack.c.l.b16 %v1543
    %v1659 = vunpack.c.l.b16 %v1544
    %v1660 = vunpack.c.h.b16 %v1544
    %v1661 = vunpack.c.l.b16 %v1545
    %v1662 = vpack.c.b16 %v1617, %v1614
    %v1663 = vpack.c.b16 %v1618, %v1615
    %v1664 = vpack.c.b16 %v1619, %v1616
    %v1665 = vpack.c.b16 %v1623, %v1620
    %v1666 = vpack.c.b16 %v1624, %v1621
    %v1667 = vpack.c.b16 %v1625, %v1622
    %v1668 = vpack.c.b16 %v1629, %v1626
    %v1669 = vpack.c.b16 %v1630, %v1627
    %v1670 = vpack.c.b16 %v1631, %v1628
    %v1671 = vpack.c.b16 %v1635, %v1632
    %v1672 = vpack.c.b16 %v1636, %v1633
    %v1673 = vpack.c.b16 %v1637, %v1634
    %v1674 = vpack.c.b16 %v1641, %v1638
    %v1675 = vpack.c.b16 %v1642, %v1639
    %v1676 = vpack.c.b16 %v1643, %v1640
    %v1677 = vpack.c.b16 %v1647, %v1644
    %v1678 = vpack.c.b16 %v1648, %v1645
    %v1679 = vpack.c.b16 %v1649, %v1646
    %v1680 = vpack.c.b16 %v1653, %v1650
    %v1681 = vpack.c.b16 %v1654, %v1651
    %v1682 = vpack.c.b16 %v1655, %v1652
    %v1683 = vpack.c.b16 %v1659, %v1656
    %v1684 = vpack.c.b16 %v1660, %v1657
    %v1685 = vpack.c.b16 %v1661, %v1658
    %v1738 = vunpack.c.l.b16 %v1546
    %v1739 = vunpack.c.l.b16 %v1547
    %v1740 = vunpack.c.l.b16 %v1548
    %v1741 = vunpack.c.l.b16 %v1549
    %v1742 = vunpack.c.l.b16 %v1550
    %v1743 = vunpack.c.l.b16 %v1551
    %v1744 = vunpack.c.l.b16 %v1552
    %v1745 = vunpack.c.l.b16 %v1553
    %v1746 = vunpack.c.l.b16 %v1554
    %v1747 = vunpack.c.l.b16 %v1555
    %v1748 = vunpack.c.l.b16 %v1556
    %v1749 = vunpack.c.l.b16 %v1557
    %v1750 = vunpack.c.l.b16 %v1558
    %v1751 = vunpack.c.l.b16 %v1559
    %v1752 = vunpack.c.l.b16 %v1560
    %v1753 = vunpack.c.l.b16 %v1561
    %v1754 = vunpack.c.l.b16 %v1562
    %v1755 = vunpack.c.l.b16 %v1563
    %v1756 = vunpack.c.l.b16 %v1564
    %v1757 = vunpack.c.l.b16 %v1565
    %v1758 = vunpack.c.l.b16 %v1566
    %v1759 = vunpack.c.l.b16 %v1567
    %v1760 = vunpack.c.l.b16 %v1568
    %v1761 = vunpack.c.l.b16 %v1569
    %v1762 = vunpack.c.l.b16 %v1570
    %v1763 = vunpack.c.l.b16 %v1571
    %v1764 = vunpack.c.l.b16 %v1572
    %v1765 = vunpack.c.l.b16 %v1573
    %v1766 = vunpack.c.l.b16 %v1574
    %v1767 = vunpack.c.l.b16 %v1575
    %v1768 = vunpack.c.l.b16 %v1576
    %v1769 = vunpack.c.l.b16 %v1577
    %v1770 = vunpack.c.l.b16 %v1578
    %v1771 = vunpack.c.l.b16 %v1579
    %v1772 = vunpack.c.l.b16 %v1580
    %v1773 = vunpack.c.l.b16 %v1581
    %v1774 = vpack.c.b16 %v1739, %v1738
    %v1775 = vpack.c.b16 %v1741, %v1740
    %v1776 = vpack.c.b16 %v1743, %v1742
    %v1777 = vpack.c.b16 %v1745, %v1744
    %v1778 = vpack.c.b16 %v1747, %v1746
    %v1779 = vpack.c.b16 %v1749, %v1748
    %v1780 = vpack.c.b16 %v1751, %v1750
    %v1781 = vpack.c.b16 %v1753, %v1752
    %v1782 = vpack.c.b16 %v1755, %v1754
    %v1783 = vpack.c.b16 %v1757, %v1756
    %v1784 = vpack.c.b16 %v1759, %v1758
    %v1785 = vpack.c.b16 %v1761, %v1760
    %v1786 = vpack.c.b16 %v1763, %v1762
    %v1787 = vpack.c.b16 %v1765, %v1764
    %v1788 = vpack.c.b16 %v1767, %v1766
    %v1789 = vpack.c.b16 %v1769, %v1768
    %v1790 = vpack.c.b16 %v1771, %v1770
    %v1791 = vpack.c.b16 %v1773, %v1772
    %v1811 = vsel %vm224, %v1664, 0
    %v1814 = vsel %vm224, %v1667, 0
    %v1817 = vsel %vm224, %v1670, 0
    %v1820 = vsel %vm224, %v1673, 0
    %v1823 = vsel %vm224, %v1676, 0
    %v1826 = vsel %vm224, %v1679, 0
    %v1829 = vsel %vm224, %v1682, 0
    %v1832 = vsel %vm224, %v1685, 0
    %1834 = vmatprep.subr.bf16.mxu0 0
    %1835 = vmatpush1.bf16.msra.mxu0 %v1781
    %1836 = vmatprep.subr.bf16.mxu0 0
    %1837 = vmatpush1.bf16.msra.mxu0 %v1780
    %1838 = vmatprep.subr.bf16.mxu0 0
    %1839 = vmatpush1.bf16.msra.mxu0 %v1779
    %1840 = vmatprep.subr.bf16.mxu0 0
    %1841 = vmatpush1.bf16.msra.mxu0 %v1778
    %1842 = vmatprep.subr.bf16.mxu0 0
    %1843 = vmatpush1.bf16.msra.mxu0 %v1777
    %1844 = vmatprep.subr.bf16.mxu0 0
    %1845 = vmatpush1.bf16.msra.mxu0 %v1776
    %1846 = vmatprep.subr.bf16.mxu0 0
    %1847 = vmatpush1.bf16.msra.mxu0 %v1775
    %1848 = vmatprep.subr.bf16.mxu0 0
    %1849 = vmatpush1.bf16.msra.mxu0 %v1774
    %1850 = vmatprep.subr.bf16.mxu0 0
    %1851 = vmatpush2.bf16.msra.mxu0 %v1789
    %1852 = vmatprep.subr.bf16.mxu0 0
    %1853 = vmatpush2.bf16.msra.mxu0 %v1788
    %1854 = vmatprep.subr.bf16.mxu0 0
    %1855 = vmatpush2.bf16.msra.mxu0 %v1787
    %1856 = vmatprep.subr.bf16.mxu0 0
    %1857 = vmatpush2.bf16.msra.mxu0 %v1786
    %1858 = vmatprep.subr.bf16.mxu0 0
    %1859 = vmatpush2.bf16.msra.mxu0 %v1785
    %1860 = vmatprep.subr.bf16.mxu0 0
    %1861 = vmatpush2.bf16.msra.mxu0 %v1784
    %1862 = vmatprep.subr.bf16.mxu0 0
    %1863 = vmatpush2.bf16.msra.mxu0 %v1783
    %1864 = vmatprep.subr.bf16.mxu0 0
    %1865 = vmatpush2.bf16.msra.mxu0 %v1782
    %1866 = vmatprep.mubr.bf16.mxu0 %v1663
    %1867 = vmatmul.mubr.bf16.gmra.mxu0 %v1662
    %v1868 = vpop.f32.mrf.mxu0
    %v1869 = vadd.f32 0.0, %v1868
    %v1870 = vpop.f32.mrf.mxu0
    %v1871 = vpop.f32.mrf.mxu0
    %v1872 = vadd.f32 0.0, %v1871
    %v1873 = vpop.f32.mrf.mxu0
    %1874 = vmatprep.mubr.bf16.mxu0 %v1666
    %1875 = vmatmul.mubr.bf16.gmra.mxu0 %v1665
    %v1876 = vpop.f32.mrf.mxu0
    %v1877 = vadd.f32 0.0, %v1876
    %v1878 = vpop.f32.mrf.mxu0
    %v1879 = vpop.f32.mrf.mxu0
    %v1880 = vadd.f32 0.0, %v1879
    %v1881 = vpop.f32.mrf.mxu0
    %1882 = vmatprep.mubr.bf16.mxu0 %v1669
    %1883 = vmatmul.mubr.bf16.gmra.mxu0 %v1668
    %v1884 = vpop.f32.mrf.mxu0
    %v1885 = vadd.f32 0.0, %v1884
    %v1886 = vpop.f32.mrf.mxu0
    %v1887 = vpop.f32.mrf.mxu0
    %v1888 = vadd.f32 0.0, %v1887
    %v1889 = vpop.f32.mrf.mxu0
    %1890 = vmatprep.mubr.bf16.mxu0 %v1672
    %1891 = vmatmul.mubr.bf16.gmra.mxu0 %v1671
    %v1892 = vpop.f32.mrf.mxu0
    %v1893 = vadd.f32 0.0, %v1892
    %v1894 = vpop.f32.mrf.mxu0
    %v1895 = vpop.f32.mrf.mxu0
    %v1896 = vadd.f32 0.0, %v1895
    %v1897 = vpop.f32.mrf.mxu0
    %1898 = vmatprep.mubr.bf16.mxu0 %v1675
    %1899 = vmatmul.mubr.bf16.gmra.mxu0 %v1674
    %v1900 = vpop.f32.mrf.mxu0
    %v1901 = vadd.f32 0.0, %v1900
    %v1902 = vpop.f32.mrf.mxu0
    %v1903 = vpop.f32.mrf.mxu0
    %v1904 = vadd.f32 0.0, %v1903
    %v1905 = vpop.f32.mrf.mxu0
    %1906 = vmatprep.mubr.bf16.mxu0 %v1678
    %1907 = vmatmul.mubr.bf16.gmra.mxu0 %v1677
    %v1908 = vpop.f32.mrf.mxu0
    %v1909 = vadd.f32 0.0, %v1908
    %v1910 = vpop.f32.mrf.mxu0
    %v1911 = vpop.f32.mrf.mxu0
    %v1912 = vadd.f32 0.0, %v1911
    %v1913 = vpop.f32.mrf.mxu0
    %1914 = vmatprep.mubr.bf16.mxu0 %v1681
    %1915 = vmatmul.mubr.bf16.gmra.mxu0 %v1680
    %v1916 = vpop.f32.mrf.mxu0
    %v1917 = vadd.f32 0.0, %v1916
    %v1918 = vpop.f32.mrf.mxu0
    %v1919 = vpop.f32.mrf.mxu0
    %v1920 = vadd.f32 0.0, %v1919
    %v1921 = vpop.f32.mrf.mxu0
    %1922 = vmatprep.mubr.bf16.mxu0 %v1684
    %1923 = vmatmul.mubr.bf16.gmra.mxu0 %v1683
    %v1924 = vpop.f32.mrf.mxu0
    %v1925 = vadd.f32 0.0, %v1924
    %v1926 = vpop.f32.mrf.mxu0
    %v1927 = vpop.f32.mrf.mxu0
    %v1928 = vadd.f32 0.0, %v1927
    %v1929 = vpop.f32.mrf.mxu0
    %1930 = vdwg.mxu0
    %1931 = vmatprep.subr.bf16.mxu0 0
    %1932 = vmatpush1.bf16.msra.mxu0 0
    %1933 = vmatprep.subr.bf16.mxu0 0
    %1934 = vmatpush1.bf16.msra.mxu0 0
    %1935 = vmatprep.subr.bf16.mxu0 0
    %1936 = vmatpush1.bf16.msra.mxu0 0
    %1937 = vmatprep.subr.bf16.mxu0 0
    %1938 = vmatpush1.bf16.msra.mxu0 0
    %1939 = vmatprep.subr.bf16.mxu0 0
    %1940 = vmatpush1.bf16.msra.mxu0 0
    %1941 = vmatprep.subr.bf16.mxu0 0
    %1942 = vmatpush1.bf16.msra.mxu0 0
    %1943 = vmatprep.subr.bf16.mxu0 0
    %1944 = vmatpush1.bf16.msra.mxu0 %v1791
    %1945 = vmatprep.subr.bf16.mxu0 0
    %1946 = vmatpush1.bf16.msra.mxu0 %v1790
    %1947 = vmatprep.subr.bf16.mxu0 0
    %1948 = vmatpush2.bf16.msra.mxu0 0
    %1949 = vmatprep.subr.bf16.mxu0 0
    %1950 = vmatpush2.bf16.msra.mxu0 0
    %1951 = vmatprep.subr.bf16.mxu0 0
    %1952 = vmatpush2.bf16.msra.mxu0 0
    %1953 = vmatprep.subr.bf16.mxu0 0
    %1954 = vmatpush2.bf16.msra.mxu0 0
    %1955 = vmatprep.subr.bf16.mxu0 0
    %1956 = vmatpush2.bf16.msra.mxu0 0
    %1957 = vmatprep.subr.bf16.mxu0 0
    %1958 = vmatpush2.bf16.msra.mxu0 0
    %1959 = vmatprep.subr.bf16.mxu0 0
    %1960 = vmatpush2.bf16.msra.mxu0 0
    %1961 = vmatprep.subr.bf16.mxu0 0
    %1962 = vmatpush2.bf16.msra.mxu0 0
    %1963 = vmatprep.mubr.bf16.mxu0 0
    %1964 = vmatmul.mubr.bf16.gmra.mxu0 %v1811
    %v1965 = vpop.f32.mrf.mxu0
    %v1966 = vadd.f32 %v1869, %v1965
    %v1967 = vpop.f32.mrf.mxu0
    %v1968 = vpop.f32.mrf.mxu0
    %v1969 = vadd.f32 %v1872, %v1968
    %v1970 = vpop.f32.mrf.mxu0
    %1971 = vmatprep.mubr.bf16.mxu0 0
    %1972 = vmatmul.mubr.bf16.gmra.mxu0 %v1814
    %v1973 = vpop.f32.mrf.mxu0
    %v1974 = vadd.f32 %v1877, %v1973
    %v1975 = vpop.f32.mrf.mxu0
    %v1976 = vpop.f32.mrf.mxu0
    %v1977 = vadd.f32 %v1880, %v1976
    %v1978 = vpop.f32.mrf.mxu0
    %1979 = vmatprep.mubr.bf16.mxu0 0
    %1980 = vmatmul.mubr.bf16.gmra.mxu0 %v1817
    %v1981 = vpop.f32.mrf.mxu0
    %v1982 = vadd.f32 %v1885, %v1981
    %v1983 = vpop.f32.mrf.mxu0
    %v1984 = vpop.f32.mrf.mxu0
    %v1985 = vadd.f32 %v1888, %v1984
    %v1986 = vpop.f32.mrf.mxu0
    %1987 = vmatprep.mubr.bf16.mxu0 0
    %1988 = vmatmul.mubr.bf16.gmra.mxu0 %v1820
    %v1989 = vpop.f32.mrf.mxu0
    %v1990 = vadd.f32 %v1893, %v1989
    %v1991 = vpop.f32.mrf.mxu0
    %v1992 = vpop.f32.mrf.mxu0
    %v1993 = vadd.f32 %v1896, %v1992
    %v1994 = vpop.f32.mrf.mxu0
    %1995 = vmatprep.mubr.bf16.mxu0 0
    %1996 = vmatmul.mubr.bf16.gmra.mxu0 %v1823
    %v1997 = vpop.f32.mrf.mxu0
    %v1998 = vadd.f32 %v1901, %v1997
    %v1999 = vpop.f32.mrf.mxu0
    %v2000 = vpop.f32.mrf.mxu0
    %v2001 = vadd.f32 %v1904, %v2000
    %v2002 = vpop.f32.mrf.mxu0
    %2003 = vmatprep.mubr.bf16.mxu0 0
    %2004 = vmatmul.mubr.bf16.gmra.mxu0 %v1826
    %v2005 = vpop.f32.mrf.mxu0
    %v2006 = vadd.f32 %v1909, %v2005
    %v2007 = vpop.f32.mrf.mxu0
    %v2008 = vpop.f32.mrf.mxu0
    %v2009 = vadd.f32 %v1912, %v2008
    %v2010 = vpop.f32.mrf.mxu0
    %2011 = vmatprep.mubr.bf16.mxu0 0
    %2012 = vmatmul.mubr.bf16.gmra.mxu0 %v1829
    %v2013 = vpop.f32.mrf.mxu0
    %v2014 = vadd.f32 %v1917, %v2013
    %v2015 = vpop.f32.mrf.mxu0
    %v2016 = vpop.f32.mrf.mxu0
    %v2017 = vadd.f32 %v1920, %v2016
    %v2018 = vpop.f32.mrf.mxu0
    %2019 = vmatprep.mubr.bf16.mxu0 0
    %2020 = vmatmul.mubr.bf16.gmra.mxu0 %v1832
    %v2021 = vpop.f32.mrf.mxu0
    %v2022 = vadd.f32 %v1925, %v2021
    %v2023 = vpop.f32.mrf.mxu0
    %v2024 = vpop.f32.mrf.mxu0
    %v2025 = vadd.f32 %v1928, %v2024
    %v2026 = vpop.f32.mrf.mxu0
    %2027 = vdwg.mxu0
    %v2028 = vld [vmem:[%s5] sm:$0x1]
    %v2029 = vld [vmem:[%s6] sm:$0x1]
    %v2030 = vsel %vm224, %v1966, 0.0
    %v2031 = vsel %vm224, %v1969, 0.0
    %v2032 = vadd.f32 %v2030, %v2031
    %v2033 = vsel %vm224, %v1974, 0.0
    %v2034 = vadd.f32 %v2032, %v2033
    %v2035 = vsel %vm224, %v1977, 0.0
    %v2036 = vadd.f32 %v2034, %v2035
    %v2037 = vsel %vm224, %v1982, 0.0
    %v2038 = vadd.f32 %v2036, %v2037
    %v2039 = vsel %vm224, %v1985, 0.0
    %v2040 = vadd.f32 %v2038, %v2039
    %v2041 = vsel %vm224, %v1990, 0.0
    %v2042 = vadd.f32 %v2040, %v2041
    %v2043 = vsel %vm224, %v1993, 0.0
    %v2044 = vadd.f32 %v2042, %v2043
    %v2045 = vsel %vm224, %v1998, 0.0
    %v2046 = vadd.f32 %v2044, %v2045
    %v2047 = vsel %vm224, %v2001, 0.0
    %v2048 = vadd.f32 %v2046, %v2047
    %v2049 = vsel %vm224, %v2006, 0.0
    %v2050 = vadd.f32 %v2048, %v2049
    %v2051 = vsel %vm224, %v2009, 0.0
    %v2052 = vadd.f32 %v2050, %v2051
    %v2053 = vsel %vm224, %v2014, 0.0
    %v2054 = vadd.f32 %v2052, %v2053
    %v2055 = vsel %vm224, %v2017, 0.0
    %v2056 = vadd.f32 %v2054, %v2055
    %v2057 = vsel %vm224, %v2022, 0.0
    %v2058 = vadd.f32 %v2056, %v2057
    %v2059 = vsel %vm224, %v2025, 0.0
    %v2060 = vadd.f32 %v2058, %v2059
    %v2061 = vrot.slane %v2060, 4
    %v2062 = vadd.f32 %v2060, %v2061
    %v2063 = vrot.slane %v2062, 2
    %v2064 = vadd.f32 %v2062, %v2063
    %v2065 = vrot.slane %v2064, 1
    %v2066 = vadd.f32 %v2064, %v2065
    %v2067 = vmul.f32 %v1966, %v1966
    %v2068 = vmul.f32 %v1969, %v1969
    %v2069 = vmul.f32 %v1974, %v1974
    %v2070 = vmul.f32 %v1977, %v1977
    %v2071 = vmul.f32 %v1982, %v1982
    %v2072 = vmul.f32 %v1985, %v1985
    %v2073 = vmul.f32 %v1990, %v1990
    %v2074 = vmul.f32 %v1993, %v1993
    %v2075 = vmul.f32 %v1998, %v1998
    %v2076 = vmul.f32 %v2001, %v2001
    %v2077 = vmul.f32 %v2006, %v2006
    %v2078 = vmul.f32 %v2009, %v2009
    %v2079 = vmul.f32 %v2014, %v2014
    %v2080 = vmul.f32 %v2017, %v2017
    %v2081 = vmul.f32 %v2022, %v2022
    %v2082 = vmul.f32 %v2025, %v2025
    %v2083 = vsel %vm224, %v2067, 0.0
    %v2084 = vsel %vm224, %v2068, 0.0
    %v2085 = vadd.f32 %v2083, %v2084
    %v2086 = vsel %vm224, %v2069, 0.0
    %v2087 = vadd.f32 %v2085, %v2086
    %v2088 = vsel %vm224, %v2070, 0.0
    %v2089 = vadd.f32 %v2087, %v2088
    %v2090 = vsel %vm224, %v2071, 0.0
    %v2091 = vadd.f32 %v2089, %v2090
    %v2092 = vsel %vm224, %v2072, 0.0
    %v2093 = vadd.f32 %v2091, %v2092
    %v2094 = vsel %vm224, %v2073, 0.0
    %v2095 = vadd.f32 %v2093, %v2094
    %v2096 = vsel %vm224, %v2074, 0.0
    %v2097 = vadd.f32 %v2095, %v2096
    %v2098 = vsel %vm224, %v2075, 0.0
    %v2099 = vadd.f32 %v2097, %v2098
    %v2100 = vsel %vm224, %v2076, 0.0
    %v2101 = vadd.f32 %v2099, %v2100
    %v2102 = vsel %vm224, %v2077, 0.0
    %v2103 = vadd.f32 %v2101, %v2102
    %v2104 = vsel %vm224, %v2078, 0.0
    %v2105 = vadd.f32 %v2103, %v2104
    %v2106 = vsel %vm224, %v2079, 0.0
    %v2107 = vadd.f32 %v2105, %v2106
    %v2108 = vsel %vm224, %v2080, 0.0
    %v2109 = vadd.f32 %v2107, %v2108
    %v2110 = vsel %vm224, %v2081, 0.0
    %v2111 = vadd.f32 %v2109, %v2110
    %v2112 = vsel %vm224, %v2082, 0.0
    %v2113 = vadd.f32 %v2111, %v2112
    %v2114 = vrot.slane %v2113, 4
    %v2115 = vadd.f32 %v2113, %v2114
    %v2116 = vrot.slane %v2115, 2
    %v2117 = vadd.f32 %v2115, %v2116
    %v2118 = vrot.slane %v2117, 1
    %v2119 = vadd.f32 %v2117, %v2118
    %v2120 = vmul.f32 %v2066, 0.0078125
    %v2121 = vmul.f32 %v2119, 0.0078125
    %v2122 = vmul.f32 %v2120, %v2120
    %v2123 = vsub.f32 %v2121, %v2122
    %v2124 = vmax.f32 %v2123, 0.0
    %v2125 = vadd.f32 %v2124, 1e-05
    %v2126 = vrsqrt.pop %v2125
    %v2127 = vmul.f32 %v2028, %v2126
    %v2128 = vmul.f32 %v2120, %v2127
    %v2129 = vsub.f32 %v2029, %v2128
    %v2131 = vlaneseq
    %v2132 = vshrl.u32 %v2131, 7
    %v2133 = vsub.s32 0, %v2132
    %v2134 = vrot.slane %v2127, %v2133
    %v2136 = vmul.f32 %v1966, %v2134
    %v2137 = vmul.f32 %v1969, %v2134
    %v2138 = vmul.f32 %v1974, %v2134
    %v2139 = vmul.f32 %v1977, %v2134
    %v2140 = vmul.f32 %v1982, %v2134
    %v2141 = vmul.f32 %v1985, %v2134
    %v2142 = vmul.f32 %v1990, %v2134
    %v2143 = vmul.f32 %v1993, %v2134
    %v2144 = vmul.f32 %v1998, %v2134
    %v2145 = vmul.f32 %v2001, %v2134
    %v2146 = vmul.f32 %v2006, %v2134
    %v2147 = vmul.f32 %v2009, %v2134
    %v2148 = vmul.f32 %v2014, %v2134
    %v2149 = vmul.f32 %v2017, %v2134
    %v2150 = vmul.f32 %v2022, %v2134
    %v2151 = vmul.f32 %v2025, %v2134
    %v2153 = vlaneseq
    %v2154 = vshrl.u32 %v2153, 7
    %v2155 = vsub.s32 0, %v2154
    %v2156 = vrot.slane %v2129, %v2155
    %v2158 = vadd.f32 %v2136, %v2156
    %v2159 = vadd.f32 %v2137, %v2156
    %v2160 = vadd.f32 %v2138, %v2156
    %v2161 = vadd.f32 %v2139, %v2156
    %v2162 = vadd.f32 %v2140, %v2156
    %v2163 = vadd.f32 %v2141, %v2156
    %v2164 = vadd.f32 %v2142, %v2156
    %v2165 = vadd.f32 %v2143, %v2156
    %v2166 = vadd.f32 %v2144, %v2156
    %v2167 = vadd.f32 %v2145, %v2156
    %v2168 = vadd.f32 %v2146, %v2156
    %v2169 = vadd.f32 %v2147, %v2156
    %v2170 = vadd.f32 %v2148, %v2156
    %v2171 = vadd.f32 %v2149, %v2156
    %v2172 = vadd.f32 %v2150, %v2156
    %v2173 = vadd.f32 %v2151, %v2156
    %v2174 = vmax.f32 %v2158, 0.0
    %v2175 = vmax.f32 %v2159, 0.0
    %v2176 = vmax.f32 %v2160, 0.0
    %v2177 = vmax.f32 %v2161, 0.0
    %v2178 = vmax.f32 %v2162, 0.0
    %v2179 = vmax.f32 %v2163, 0.0
    %v2180 = vmax.f32 %v2164, 0.0
    %v2181 = vmax.f32 %v2165, 0.0
    %v2182 = vmax.f32 %v2166, 0.0
    %v2183 = vmax.f32 %v2167, 0.0
    %v2184 = vmax.f32 %v2168, 0.0
    %v2185 = vmax.f32 %v2169, 0.0
    %v2186 = vmax.f32 %v2170, 0.0
    %v2187 = vmax.f32 %v2171, 0.0
    %v2188 = vmax.f32 %v2172, 0.0
    %v2189 = vmax.f32 %v2173, 0.0
    %v2190 = vpack.c.bf16 %v2175, %v2174
    %v2191 = vpack.c.bf16 %v2177, %v2176
    %v2192 = vpack.c.bf16 %v2179, %v2178
    %v2193 = vpack.c.bf16 %v2181, %v2180
    %v2194 = vpack.c.bf16 %v2183, %v2182
    %v2195 = vpack.c.bf16 %v2185, %v2184
    %v2196 = vpack.c.bf16 %v2187, %v2186
    %v2197 = vpack.c.bf16 %v2189, %v2188
    %v2198 = vld [vmem:[%s7] sm:$0xf]
    %v2199 = vld [vmem:[%s7 + $0x4] sm:$0xf]
    %v2200 = vld [vmem:[%s7 + $0x8] sm:$0xf]
    %v2201 = vld [vmem:[%s7 + $0xc] sm:$0xf]
    %v2206 = vunpack.c.l.b16 %v2198
    %v2207 = vunpack.c.l.b16 %v2199
    %v2208 = vunpack.c.l.b16 %v2200
    %v2209 = vunpack.c.l.b16 %v2201
    %v2210 = vpack.c.b16 %v2207, %v2206
    %v2211 = vpack.c.b16 %v2209, %v2208
    %v2215 = vsel %vm224, %v2190, 0
    %v2218 = vsel %vm224, %v2191, 0
    %v2221 = vsel %vm224, %v2192, 0
    %v2224 = vsel %vm224, %v2193, 0
    %v2227 = vsel %vm224, %v2194, 0
    %v2230 = vsel %vm224, %v2195, 0
    %v2233 = vsel %vm224, %v2196, 0
    %v2236 = vsel %vm224, %v2197, 0
    %2238 = vmatprep.subr.bf16.mxu0 0
    %2239 = vmatpush1.bf16.msra.mxu0 0
    %2240 = vmatprep.subr.bf16.mxu0 0
    %2241 = vmatpush1.bf16.msra.mxu0 0
    %2242 = vmatprep.subr.bf16.mxu0 0
    %2243 = vmatpush1.bf16.msra.mxu0 0
    %2244 = vmatprep.subr.bf16.mxu0 0
    %2245 = vmatpush1.bf16.msra.mxu0 0
    %2246 = vmatprep.subr.bf16.mxu0 0
    %2247 = vmatpush1.bf16.msra.mxu0 0
    %2248 = vmatprep.subr.bf16.mxu0 0
    %2249 = vmatpush1.bf16.msra.mxu0 0
    %2250 = vmatprep.subr.bf16.mxu0 0
    %2251 = vmatpush1.bf16.msra.mxu0 %v2211
    %2252 = vmatprep.subr.bf16.mxu0 0
    %2253 = vmatpush1.bf16.msra.mxu0 %v2210
    %2254 = vmatprep.subr.bf16.mxu0 0
    %2255 = vmatpush2.bf16.msra.mxu0 0
    %2256 = vmatprep.subr.bf16.mxu0 0
    %2257 = vmatpush2.bf16.msra.mxu0 0
    %2258 = vmatprep.subr.bf16.mxu0 0
    %2259 = vmatpush2.bf16.msra.mxu0 0
    %2260 = vmatprep.subr.bf16.mxu0 0
    %2261 = vmatpush2.bf16.msra.mxu0 0
    %2262 = vmatprep.subr.bf16.mxu0 0
    %2263 = vmatpush2.bf16.msra.mxu0 0
    %2264 = vmatprep.subr.bf16.mxu0 0
    %2265 = vmatpush2.bf16.msra.mxu0 0
    %2266 = vmatprep.subr.bf16.mxu0 0
    %2267 = vmatpush2.bf16.msra.mxu0 0
    %2268 = vmatprep.subr.bf16.mxu0 0
    %2269 = vmatpush2.bf16.msra.mxu0 0
    %2270 = vmatprep.mubr.bf16.mxu0 0
    %2271 = vmatmul.mubr.bf16.gmra.mxu0 %v2215
    %v2272 = vpop.f32.mrf.mxu0
    %v2273 = vadd.f32 0.0, %v2272
    %v2274 = vpop.f32.mrf.mxu0
    %v2275 = vpop.f32.mrf.mxu0
    %v2276 = vadd.f32 0.0, %v2275
    %v2277 = vpop.f32.mrf.mxu0
    %2278 = vmatprep.mubr.bf16.mxu0 0
    %2279 = vmatmul.mubr.bf16.gmra.mxu0 %v2218
    %v2280 = vpop.f32.mrf.mxu0
    %v2281 = vadd.f32 0.0, %v2280
    %v2282 = vpop.f32.mrf.mxu0
    %v2283 = vpop.f32.mrf.mxu0
    %v2284 = vadd.f32 0.0, %v2283
    %v2285 = vpop.f32.mrf.mxu0
    %2286 = vmatprep.mubr.bf16.mxu0 0
    %2287 = vmatmul.mubr.bf16.gmra.mxu0 %v2221
    %v2288 = vpop.f32.mrf.mxu0
    %v2289 = vadd.f32 0.0, %v2288
    %v2290 = vpop.f32.mrf.mxu0
    %v2291 = vpop.f32.mrf.mxu0
    %v2292 = vadd.f32 0.0, %v2291
    %v2293 = vpop.f32.mrf.mxu0
    %2294 = vmatprep.mubr.bf16.mxu0 0
    %2295 = vmatmul.mubr.bf16.gmra.mxu0 %v2224
    %v2296 = vpop.f32.mrf.mxu0
    %v2297 = vadd.f32 0.0, %v2296
    %v2298 = vpop.f32.mrf.mxu0
    %v2299 = vpop.f32.mrf.mxu0
    %v2300 = vadd.f32 0.0, %v2299
    %v2301 = vpop.f32.mrf.mxu0
    %2302 = vmatprep.mubr.bf16.mxu0 0
    %2303 = vmatmul.mubr.bf16.gmra.mxu0 %v2227
    %v2304 = vpop.f32.mrf.mxu0
    %v2305 = vadd.f32 0.0, %v2304
    %v2306 = vpop.f32.mrf.mxu0
    %v2307 = vpop.f32.mrf.mxu0
    %v2308 = vadd.f32 0.0, %v2307
    %v2309 = vpop.f32.mrf.mxu0
    %2310 = vmatprep.mubr.bf16.mxu0 0
    %2311 = vmatmul.mubr.bf16.gmra.mxu0 %v2230
    %v2312 = vpop.f32.mrf.mxu0
    %v2313 = vadd.f32 0.0, %v2312
    %v2314 = vpop.f32.mrf.mxu0
    %v2315 = vpop.f32.mrf.mxu0
    %v2316 = vadd.f32 0.0, %v2315
    %v2317 = vpop.f32.mrf.mxu0
    %2318 = vmatprep.mubr.bf16.mxu0 0
    %2319 = vmatmul.mubr.bf16.gmra.mxu0 %v2233
    %v2320 = vpop.f32.mrf.mxu0
    %v2321 = vadd.f32 0.0, %v2320
    %v2322 = vpop.f32.mrf.mxu0
    %v2323 = vpop.f32.mrf.mxu0
    %v2324 = vadd.f32 0.0, %v2323
    %v2325 = vpop.f32.mrf.mxu0
    %2326 = vmatprep.mubr.bf16.mxu0 0
    %2327 = vmatmul.mubr.bf16.gmra.mxu0 %v2236
    %v2328 = vpop.f32.mrf.mxu0
    %v2329 = vadd.f32 0.0, %v2328
    %v2330 = vpop.f32.mrf.mxu0
    %v2331 = vpop.f32.mrf.mxu0
    %v2332 = vadd.f32 0.0, %v2331
    %v2333 = vpop.f32.mrf.mxu0
    %2334 = vdwg.mxu0
    %v2335 = vld [vmem:[%s8] sm:$0x1]
    %v2336 = vld [vmem:[%s9] sm:$0x1]
    %v2337 = vadd.f32 %v2273, %v2276
    %v2338 = vadd.f32 %v2337, %v2281
    %v2339 = vadd.f32 %v2338, %v2284
    %v2340 = vadd.f32 %v2339, %v2289
    %v2341 = vadd.f32 %v2340, %v2292
    %v2342 = vadd.f32 %v2341, %v2297
    %v2343 = vadd.f32 %v2342, %v2300
    %v2344 = vadd.f32 %v2343, %v2305
    %v2345 = vadd.f32 %v2344, %v2308
    %v2346 = vadd.f32 %v2345, %v2313
    %v2347 = vadd.f32 %v2346, %v2316
    %v2348 = vadd.f32 %v2347, %v2321
    %v2349 = vadd.f32 %v2348, %v2324
    %v2350 = vadd.f32 %v2349, %v2329
    %v2351 = vadd.f32 %v2350, %v2332
    %v2352 = vrot.slane %v2351, 4
    %v2353 = vadd.f32 %v2351, %v2352
    %v2354 = vrot.slane %v2353, 2
    %v2355 = vadd.f32 %v2353, %v2354
    %v2356 = vrot.slane %v2355, 1
    %v2357 = vadd.f32 %v2355, %v2356
    %v2358 = vmul.f32 %v2273, %v2273
    %v2359 = vmul.f32 %v2276, %v2276
    %v2360 = vmul.f32 %v2281, %v2281
    %v2361 = vmul.f32 %v2284, %v2284
    %v2362 = vmul.f32 %v2289, %v2289
    %v2363 = vmul.f32 %v2292, %v2292
    %v2364 = vmul.f32 %v2297, %v2297
    %v2365 = vmul.f32 %v2300, %v2300
    %v2366 = vmul.f32 %v2305, %v2305
    %v2367 = vmul.f32 %v2308, %v2308
    %v2368 = vmul.f32 %v2313, %v2313
    %v2369 = vmul.f32 %v2316, %v2316
    %v2370 = vmul.f32 %v2321, %v2321
    %v2371 = vmul.f32 %v2324, %v2324
    %v2372 = vmul.f32 %v2329, %v2329
    %v2373 = vmul.f32 %v2332, %v2332
    %v2374 = vadd.f32 %v2358, %v2359
    %v2375 = vadd.f32 %v2374, %v2360
    %v2376 = vadd.f32 %v2375, %v2361
    %v2377 = vadd.f32 %v2376, %v2362
    %v2378 = vadd.f32 %v2377, %v2363
    %v2379 = vadd.f32 %v2378, %v2364
    %v2380 = vadd.f32 %v2379, %v2365
    %v2381 = vadd.f32 %v2380, %v2366
    %v2382 = vadd.f32 %v2381, %v2367
    %v2383 = vadd.f32 %v2382, %v2368
    %v2384 = vadd.f32 %v2383, %v2369
    %v2385 = vadd.f32 %v2384, %v2370
    %v2386 = vadd.f32 %v2385, %v2371
    %v2387 = vadd.f32 %v2386, %v2372
    %v2388 = vadd.f32 %v2387, %v2373
    %v2389 = vrot.slane %v2388, 4
    %v2390 = vadd.f32 %v2388, %v2389
    %v2391 = vrot.slane %v2390, 2
    %v2392 = vadd.f32 %v2390, %v2391
    %v2393 = vrot.slane %v2392, 1
    %v2394 = vadd.f32 %v2392, %v2393
    %v2395 = vmul.f32 %v2357, 0.0078125
    %v2396 = vmul.f32 %v2394, 0.0078125
    %v2397 = vmul.f32 %v2395, %v2395
    %v2398 = vsub.f32 %v2396, %v2397
    %v2399 = vmax.f32 %v2398, 0.0
    %v2400 = vadd.f32 %v2399, 1e-05
    %v2401 = vrsqrt.pop %v2400
    %v2402 = vmul.f32 %v2335, %v2401
    %v2403 = vmul.f32 %v2395, %v2402
    %v2404 = vsub.f32 %v2336, %v2403
    %v2406 = vlaneseq
    %v2407 = vshrl.u32 %v2406, 7
    %v2408 = vsub.s32 0, %v2407
    %v2409 = vrot.slane %v2402, %v2408
    %v2411 = vmul.f32 %v2273, %v2409
    %v2412 = vmul.f32 %v2276, %v2409
    %v2413 = vmul.f32 %v2281, %v2409
    %v2414 = vmul.f32 %v2284, %v2409
    %v2415 = vmul.f32 %v2289, %v2409
    %v2416 = vmul.f32 %v2292, %v2409
    %v2417 = vmul.f32 %v2297, %v2409
    %v2418 = vmul.f32 %v2300, %v2409
    %v2419 = vmul.f32 %v2305, %v2409
    %v2420 = vmul.f32 %v2308, %v2409
    %v2421 = vmul.f32 %v2313, %v2409
    %v2422 = vmul.f32 %v2316, %v2409
    %v2423 = vmul.f32 %v2321, %v2409
    %v2424 = vmul.f32 %v2324, %v2409
    %v2425 = vmul.f32 %v2329, %v2409
    %v2426 = vmul.f32 %v2332, %v2409
    %v2428 = vlaneseq
    %v2429 = vshrl.u32 %v2428, 7
    %v2430 = vsub.s32 0, %v2429
    %v2431 = vrot.slane %v2404, %v2430
    %v2433 = vadd.f32 %v2411, %v2431
    %v2434 = vadd.f32 %v2412, %v2431
    %v2435 = vadd.f32 %v2413, %v2431
    %v2436 = vadd.f32 %v2414, %v2431
    %v2437 = vadd.f32 %v2415, %v2431
    %v2438 = vadd.f32 %v2416, %v2431
    %v2439 = vadd.f32 %v2417, %v2431
    %v2440 = vadd.f32 %v2418, %v2431
    %v2441 = vadd.f32 %v2419, %v2431
    %v2442 = vadd.f32 %v2420, %v2431
    %v2443 = vadd.f32 %v2421, %v2431
    %v2444 = vadd.f32 %v2422, %v2431
    %v2445 = vadd.f32 %v2423, %v2431
    %v2446 = vadd.f32 %v2424, %v2431
    %v2447 = vadd.f32 %v2425, %v2431
    %v2448 = vadd.f32 %v2426, %v2431
    %v2449 = vadd.f32 %v2433, %v37
    %v2450 = vadd.f32 %v2434, %v38
    %v2451 = vadd.f32 %v2435, %v39
    %v2452 = vadd.f32 %v2436, %v40
    %v2453 = vadd.f32 %v2437, %v41
    %v2454 = vadd.f32 %v2438, %v42
    %v2455 = vadd.f32 %v2439, %v43
    %v2456 = vadd.f32 %v2440, %v44
    %v2457 = vadd.f32 %v2441, %v45
    %v2458 = vadd.f32 %v2442, %v46
    %v2459 = vadd.f32 %v2443, %v47
    %v2460 = vadd.f32 %v2444, %v48
    %v2461 = vadd.f32 %v2445, %v49
    %v2462 = vadd.f32 %v2446, %v50
    %v2463 = vadd.f32 %v2447, %v51
    %v2464 = vadd.f32 %v2448, %v52
    %v2465 = vmax.f32 %v2449, 0.0
    %v2466 = vmax.f32 %v2450, 0.0
    %v2467 = vmax.f32 %v2451, 0.0
    %v2468 = vmax.f32 %v2452, 0.0
    %v2469 = vmax.f32 %v2453, 0.0
    %v2470 = vmax.f32 %v2454, 0.0
    %v2471 = vmax.f32 %v2455, 0.0
    %v2472 = vmax.f32 %v2456, 0.0
    %v2473 = vmax.f32 %v2457, 0.0
    %v2474 = vmax.f32 %v2458, 0.0
    %v2475 = vmax.f32 %v2459, 0.0
    %v2476 = vmax.f32 %v2460, 0.0
    %v2477 = vmax.f32 %v2461, 0.0
    %v2478 = vmax.f32 %v2462, 0.0
    %v2479 = vmax.f32 %v2463, 0.0
    %v2480 = vmax.f32 %v2464, 0.0
    %2481 = vst [vmem:[#allocation4] sm:$0xff] %v2465
    %2482 = vst [vmem:[#allocation4 + $0x8] sm:$0xff] %v2466
    %2483 = vst [vmem:[#allocation4 + $0x10] sm:$0xff] %v2467
    %2484 = vst [vmem:[#allocation4 + $0x18] sm:$0xff] %v2468
    %2485 = vst [vmem:[#allocation4 + $0x20] sm:$0xff] %v2469
    %2486 = vst [vmem:[#allocation4 + $0x28] sm:$0xff] %v2470
    %2487 = vst [vmem:[#allocation4 + $0x30] sm:$0xff] %v2471
    %2488 = vst [vmem:[#allocation4 + $0x38] sm:$0xff] %v2472
    %2489 = vst [vmem:[#allocation4 + $0x40] sm:$0xff] %v2473
    %2490 = vst [vmem:[#allocation4 + $0x48] sm:$0xff] %v2474
    %2491 = vst [vmem:[#allocation4 + $0x50] sm:$0xff] %v2475
    %2492 = vst [vmem:[#allocation4 + $0x58] sm:$0xff] %v2476
    %2493 = vst [vmem:[#allocation4 + $0x60] sm:$0xff] %v2477
    %2494 = vst [vmem:[#allocation4 + $0x68] sm:$0xff] %v2478
    %2495 = vst [vmem:[#allocation4 + $0x70] sm:$0xff] %v2479
    %2496 = vst [vmem:[#allocation4 + $0x78] sm:$0xff] %v2480
    // Predicated region
    $region42: #{tpu_custom_call.1} parent=1 // pred_check
      _
    $region43: #{tpu_custom_call.1} parent=1 // pred_check_branch
      %2498 = sbr.rel (0) target = $region45
    $region44: #{tpu_custom_call.1} parent=1 // pred_region
      %s2500 = ssub.s32 2048, 2048
      %2501 = vsyncadd [#allocation5], %s2500
      %s2502 = sshll.u32 [#allocation4], 4
      %s2503 = int_to_ptr.vmem [resolvable:$true] %s2502
      %2508 = dma.vmem_to_hbm [thread:$0]  %s2503, 2048, %s10, [#allocation5], 128, 128, 8
    $region45: #{tpu_custom_call.1} parent=1 // pred_fallthru
      _
    // Predicated region
    $region46: #{tpu_custom_call.1} parent=1 // pred_check
      _
    $region47: #{tpu_custom_call.1} parent=1 // pred_check_branch
      %2510 = sbr.rel (0) target = $region49
    $region48: #{tpu_custom_call.1} parent=1 // pred_region
      %2511 = dma.done [#allocation5], 2048
    $region49: #{tpu_custom_call.1} parent=1 // pred_fallthru
      _
    %2512 = vsyncpa [#allocation5], 1

</llo_original>
